<compile_context>
chip_gen: v6e
topology: v6e:2x2x1
jax: 0.10.0
libtpu: 0.0.40
codegen_flags: <defaults>
</compile_context>

<pallas_src>
import functools

import jax
import jax.numpy as jnp
from jax.experimental import pallas as pl
from jax.experimental.pallas import tpu as pltpu


def _round_up(x, m):
    return ((x + m - 1) // m) * m


def mlp_kernel(x_ref, w1_ref, b1_ref, w2_ref, b2_ref, w3_ref, b3_ref, o_ref):
    # fc1 + ReLU: MXU matmul with f32 accumulation; bias/ReLU on the VPU in f32
    # (f32 activations keep the kernel correct on v5e, which has no bf16 VPU).
    h1 = jnp.dot(x_ref[...], w1_ref[...], preferred_element_type=jnp.float32)
    h1 = jnp.maximum(h1 + b1_ref[...], 0.0)
    # fc2 + ReLU
    h2 = jnp.dot(h1.astype(w2_ref.dtype), w2_ref[...],
                 preferred_element_type=jnp.float32)
    h2 = jnp.maximum(h2 + b2_ref[...], 0.0)
    # fc3 (no activation) -- output dim is lane-padded to a multiple of 128 so
    # the store is an unmasked, lane-dense vst.
    out = jnp.dot(h2.astype(w3_ref.dtype), w3_ref[...],
                  preferred_element_type=jnp.float32)
    o_ref[...] = (out + b3_ref[...]).astype(o_ref.dtype)


def prepare_params(params, compute_dtype=jnp.bfloat16, lane=128):
    """One-time preparation: cast weights to the MXU operand dtype, keep biases
    in f32, and zero-pad the fc3 output dim to a multiple of 128 lanes.
    Hoisted out of the per-forward path so no per-call HBM pad/cast passes.

    Weights are stored as (in_features, out_features), i.e. transposed vs.
    torch, so x @ W + b == torch's x @ W.T + b.
    Returns (prepared_params_dict, num_outputs).
    """
    w1, b1 = params["w1"], params["b1"]
    w2, b2 = params["w2"], params["b2"]
    w3, b3 = params["w3"], params["b3"]
    no = int(w3.shape[1])
    no_p = max(lane, _round_up(no, lane))
    if no_p != no:
        w3 = jnp.pad(w3, ((0, 0), (0, no_p - no)))
        b3 = jnp.pad(b3, ((0, 0), (0, no_p - no)))
    prepared = {
        "w1": w1.astype(compute_dtype), "b1": b1.astype(jnp.float32),
        "w2": w2.astype(compute_dtype), "b2": b2.astype(jnp.float32),
        "w3": w3.astype(compute_dtype), "b3": b3.astype(jnp.float32),
    }
    return prepared, no


@functools.partial(jax.jit, static_argnames=("num_outputs", "block_batch"))
def net_forward(x, prepared, *, num_outputs, block_batch=512):
    """Forward pass of Net.  x: (B, Ni); prepared: output of prepare_params."""
    w1, b1 = prepared["w1"], prepared["b1"]
    w2, b2 = prepared["w2"], prepared["b2"]
    w3, b3 = prepared["w3"], prepared["b3"]

    B, Ni = x.shape
    Nh1 = w1.shape[1]
    Nh2 = w2.shape[1]
    No_p = w3.shape[1]                     # lane-padded output width
    compute_dtype = w1.dtype

    # Batch tile: multiple of the sublane pack (16 for bf16, 8 for f32).
    pack = 16 if jnp.dtype(compute_dtype).itemsize == 2 else 8
    TB = min(block_batch, _round_up(B, pack))
    TB = _round_up(TB, pack)
    grid = (pl.cdiv(B, TB),)               # partial last block allowed; OOB
                                            # rows are masked on store.

    xc = x.astype(compute_dtype)            # bf16 operands by default

    resident = lambda i: (0, 0)             # weights/biases stay in VMEM
    in_specs = [
        pl.BlockSpec((TB, Ni), lambda i: (i, 0)),   # x tile, pipelined
        pl.BlockSpec((Ni, Nh1), resident),          # w1
        pl.BlockSpec((1, Nh1), resident),           # b1 (f32)
        pl.BlockSpec((Nh1, Nh2), resident),         # w2
        pl.BlockSpec((1, Nh2), resident),           # b2 (f32)
        pl.BlockSpec((Nh2, No_p), resident),        # w3 (lane-padded)
        pl.BlockSpec((1, No_p), resident),          # b3 (lane-padded, f32)
    ]
    out_specs = pl.BlockSpec((TB, No_p), lambda i: (i, 0))

    elt = jnp.dtype(compute_dtype).itemsize
    flops = 2 * B * (Ni * Nh1 + Nh1 * Nh2 + Nh2 * No_p)
    bytes_accessed = (
        B * Ni * elt                                    # x
        + (Ni * Nh1 + Nh1 * Nh2 + Nh2 * No_p) * elt     # weights
        + (Nh1 + Nh2 + No_p) * 4                        # biases (f32)
        + B * No_p * 4                                  # output (f32)
    )

    out_padded = pl.pallas_call(
        mlp_kernel,
        out_shape=jax.ShapeDtypeStruct((B, No_p), jnp.float32),
        grid=grid,
        in_specs=in_specs,
        out_specs=out_specs,
        compiler_params=pltpu.CompilerParams(
            # Batch tiles are independent -> shard across TCs on v7x megacore.
            dimension_semantics=("parallel",),
        ),
        cost_estimate=pl.CostEstimate(
            flops=flops, transcendentals=0, bytes_accessed=bytes_accessed),
    )(xc, w1, b1, w2, b2, w3, b3)

    # Strip only the output-lane padding; batch tail never materialized.
    return out_padded[:, :num_outputs]


def init_params(key, Ni=784, Nh1=256, Nh2=256, No=10):
    """Deterministic init mimicking torch.nn.Linear default
    (U[-1/sqrt(fan_in), 1/sqrt(fan_in)]).  Weights stored as (in, out)."""
    def linear(key, fan_in, fan_out):
        kw, kb = jax.random.split(key)
        bound = 1.0 / jnp.sqrt(fan_in)
        w = jax.random.uniform(kw, (fan_in, fan_out), jnp.float32, -bound, bound)
        b = jax.random.uniform(kb, (1, fan_out), jnp.float32, -bound, bound)
        return w, b

    k1, k2, k3 = jax.random.split(key, 3)
    w1, b1 = linear(k1, Ni, Nh1)
    w2, b2 = linear(k2, Nh1, Nh2)
    w3, b3 = linear(k3, Nh2, No)
    return {"w1": w1, "b1": b1, "w2": w2, "b2": b2, "w3": w3, "b3": b3}


if __name__ == "__main__":
    key = jax.random.PRNGKey(0)
    kx, kp = jax.random.split(key)

    B, Ni, Nh1, Nh2, No = 300, 784, 256, 256, 10
    x = jax.random.normal(kx, (B, Ni), jnp.float32)
    params = init_params(kp, Ni=Ni, Nh1=Nh1, Nh2=Nh2, No=No)

    # Pure-JAX reference of the same forward semantics (high-precision dots).
    hp = jax.lax.Precision.HIGHEST
    h1 = jnp.maximum(jnp.dot(x, params["w1"], precision=hp) + params["b1"], 0.0)
    h2 = jnp.maximum(jnp.dot(h1, params["w2"], precision=hp) + params["b2"], 0.0)
    ref = jnp.dot(h2, params["w3"], precision=hp) + params["b3"]

    # Default bf16 MXU-operand path.  block_batch=128 with B=300 exercises a
    # multi-step batch grid (grid=(3,)) with a partial, masked last tile plus
    # output lane padding (10 -> 128).
    prep_bf16, num_out = prepare_params(params, jnp.bfloat16)
    out = jax.block_until_ready(
        net_forward(x, prep_bf16, num_outputs=num_out, block_batch=128))
    assert out.shape == (B, No)
    assert jnp.allclose(out, ref, atol=0.2, rtol=0.05)

    # Strict f32 operand path: single large tile (grid=(1,), TB=304).
    prep_f32, _ = prepare_params(params, jnp.float32)
    out_f32 = jax.block_until_ready(
        net_forward(x, prep_f32, num_outputs=num_out, block_batch=512))
    assert out_f32.shape == (B, No)
    assert jnp.allclose(out_f32, ref, atol=5e-3, rtol=5e-3)

    # TODO(synk): the torch module's `additional_out=True` branch (returning
    # the fc2 activations as well) is not exposed; only the default path is.
    print("KERNEL_OK")
</pallas_src>

<mosaic_0001>
module attributes {stable_mosaic.version = 11 : i64} {
  func.func @mlp_kernel(%arg0: i32, %arg1: memref<128x784xbf16, #tpu.memory_space<vmem>>, %arg2: memref<784x256xbf16, #tpu.memory_space<vmem>>, %arg3: memref<1x256xf32, #tpu.memory_space<vmem>>, %arg4: memref<256x256xbf16, #tpu.memory_space<vmem>>, %arg5: memref<1x256xf32, #tpu.memory_space<vmem>>, %arg6: memref<256x128xbf16, #tpu.memory_space<vmem>>, %arg7: memref<1x128xf32, #tpu.memory_space<vmem>>, %arg8: memref<128x128xf32, #tpu.memory_space<vmem>>) attributes {dimension_semantics = [#tpu.dimension_semantics<parallel>], iteration_bounds = array<i64: 3>, scalar_prefetch = 0 : i64, scratch_operands = 0 : i64, tpu.core_type = #tpu.core_type<tc>, window_params = [{transform_indices = @transform_0, window_bounds = array<i64: 128, 784>}, {pipeline_mode = #tpu.pipeline_mode<synchronous>, transform_indices = @transform_1, window_bounds = array<i64: 784, 256>}, {pipeline_mode = #tpu.pipeline_mode<synchronous>, transform_indices = @transform_2, window_bounds = array<i64: 1, 256>}, {pipeline_mode = #tpu.pipeline_mode<synchronous>, transform_indices = @transform_3, window_bounds = array<i64: 256, 256>}, {pipeline_mode = #tpu.pipeline_mode<synchronous>, transform_indices = @transform_4, window_bounds = array<i64: 1, 256>}, {pipeline_mode = #tpu.pipeline_mode<synchronous>, transform_indices = @transform_5, window_bounds = array<i64: 256, 128>}, {pipeline_mode = #tpu.pipeline_mode<synchronous>, transform_indices = @transform_6, window_bounds = array<i64: 1, 128>}, {transform_indices = @transform_7, window_bounds = array<i64: 128, 128>}]} {
    %c0 = arith.constant 0 : index
    %c0_0 = arith.constant 0 : index
    %0 = vector.load %arg1[%c0, %c0_0] : memref<128x784xbf16, #tpu.memory_space<vmem>>, vector<128x784xbf16>
    %c0_1 = arith.constant 0 : index
    %c0_2 = arith.constant 0 : index
    %1 = vector.load %arg2[%c0_1, %c0_2] : memref<784x256xbf16, #tpu.memory_space<vmem>>, vector<784x256xbf16>
    %cst = arith.constant dense<0.000000e+00> : vector<128x256xf32>
    %2 = tpu.matmul %0, %1, %cst {dimension_numbers = #tpu.dot_dimension_numbers<[1], [0], [0], [1], [0, 0, 1, 1], [], []>} : vector<128x784xbf16>, vector<784x256xbf16>, vector<128x256xf32> -> vector<128x256xf32>
    %c0_3 = arith.constant 0 : index
    %c0_4 = arith.constant 0 : index
    %3 = vector.load %arg3[%c0_3, %c0_4] : memref<1x256xf32, #tpu.memory_space<vmem>>, vector<1x256xf32>
    %4 = vector.broadcast %3 : vector<1x256xf32> to vector<128x256xf32>
    %5 = arith.addf %2, %4 : vector<128x256xf32>
    %cst_5 = arith.constant 0.000000e+00 : f32
    %6 = vector.broadcast %cst_5 : f32 to vector<128x256xf32>
    %7 = arith.maximumf %5, %6 : vector<128x256xf32>
    %8 = arith.truncf %7 : vector<128x256xf32> to vector<128x256xbf16>
    %c0_6 = arith.constant 0 : index
    %c0_7 = arith.constant 0 : index
    %9 = vector.load %arg4[%c0_6, %c0_7] : memref<256x256xbf16, #tpu.memory_space<vmem>>, vector<256x256xbf16>
    %cst_8 = arith.constant dense<0.000000e+00> : vector<128x256xf32>
    %10 = tpu.matmul %8, %9, %cst_8 {dimension_numbers = #tpu.dot_dimension_numbers<[1], [0], [0], [1], [0, 0, 1, 1], [], []>} : vector<128x256xbf16>, vector<256x256xbf16>, vector<128x256xf32> -> vector<128x256xf32>
    %c0_9 = arith.constant 0 : index
    %c0_10 = arith.constant 0 : index
    %11 = vector.load %arg5[%c0_9, %c0_10] : memref<1x256xf32, #tpu.memory_space<vmem>>, vector<1x256xf32>
    %12 = vector.broadcast %11 : vector<1x256xf32> to vector<128x256xf32>
    %13 = arith.addf %10, %12 : vector<128x256xf32>
    %cst_11 = arith.constant 0.000000e+00 : f32
    %14 = vector.broadcast %cst_11 : f32 to vector<128x256xf32>
    %15 = arith.maximumf %13, %14 : vector<128x256xf32>
    %16 = arith.truncf %15 : vector<128x256xf32> to vector<128x256xbf16>
    %c0_12 = arith.constant 0 : index
    %c0_13 = arith.constant 0 : index
    %17 = vector.load %arg6[%c0_12, %c0_13] : memref<256x128xbf16, #tpu.memory_space<vmem>>, vector<256x128xbf16>
    %cst_14 = arith.constant dense<0.000000e+00> : vector<128x128xf32>
    %18 = tpu.matmul %16, %17, %cst_14 {dimension_numbers = #tpu.dot_dimension_numbers<[1], [0], [0], [1], [0, 0, 1, 1], [], []>} : vector<128x256xbf16>, vector<256x128xbf16>, vector<128x128xf32> -> vector<128x128xf32>
    %c0_15 = arith.constant 0 : index
    %c0_16 = arith.constant 0 : index
    %19 = vector.load %arg7[%c0_15, %c0_16] : memref<1x128xf32, #tpu.memory_space<vmem>>, vector<1x128xf32>
    %20 = vector.broadcast %19 : vector<1x128xf32> to vector<128x128xf32>
    %21 = arith.addf %18, %20 : vector<128x128xf32>
    %c0_17 = arith.constant 0 : index
    %c0_18 = arith.constant 0 : index
    %22 = vector.load %arg8[%c0_17, %c0_18] : memref<128x128xf32, #tpu.memory_space<vmem>>, vector<128x128xf32>
    tpu.vector_store %arg8[%c0_17, %c0_18], %21 {strides = array<i32>} : memref<128x128xf32, #tpu.memory_space<vmem>>, vector<128x128xf32>,
    return
  }
  func.func @transform_0(%arg0: i32) -> (i32, i32) {
    %c0_i32 = arith.constant 0 : i32
    %c0_i32_0 = arith.constant 0 : i32
    return %arg0, %c0_i32 : i32, i32
  }
  func.func @transform_1(%arg0: i32) -> (i32, i32) {
    %c0_i32 = arith.constant 0 : i32
    %c0_i32_0 = arith.constant 0 : i32
    %c0_i32_1 = arith.constant 0 : i32
    return %c0_i32, %c0_i32_0 : i32, i32
  }
  func.func @transform_2(%arg0: i32) -> (i32, i32) {
    %c0_i32 = arith.constant 0 : i32
    %c0_i32_0 = arith.constant 0 : i32
    %c0_i32_1 = arith.constant 0 : i32
    return %c0_i32, %c0_i32_0 : i32, i32
  }
  func.func @transform_3(%arg0: i32) -> (i32, i32) {
    %c0_i32 = arith.constant 0 : i32
    %c0_i32_0 = arith.constant 0 : i32
    %c0_i32_1 = arith.constant 0 : i32
    return %c0_i32, %c0_i32_0 : i32, i32
  }
  func.func @transform_4(%arg0: i32) -> (i32, i32) {
    %c0_i32 = arith.constant 0 : i32
    %c0_i32_0 = arith.constant 0 : i32
    %c0_i32_1 = arith.constant 0 : i32
    return %c0_i32, %c0_i32_0 : i32, i32
  }
  func.func @transform_5(%arg0: i32) -> (i32, i32) {
    %c0_i32 = arith.constant 0 : i32
    %c0_i32_0 = arith.constant 0 : i32
    %c0_i32_1 = arith.constant 0 : i32
    return %c0_i32, %c0_i32_0 : i32, i32
  }
  func.func @transform_6(%arg0: i32) -> (i32, i32) {
    %c0_i32 = arith.constant 0 : i32
    %c0_i32_0 = arith.constant 0 : i32
    %c0_i32_1 = arith.constant 0 : i32
    return %c0_i32, %c0_i32_0 : i32, i32
  }
  func.func @transform_7(%arg0: i32) -> (i32, i32) {
    %c0_i32 = arith.constant 0 : i32
    %c0_i32_0 = arith.constant 0 : i32
    return %arg0, %c0_i32 : i32, i32
  }
}

</mosaic_0001>

<llo_original>
// kernel: net_forward.1
$region0: #{net_forward.1}
  #allocation0 [shape = 'u32[]', space=smem, size = 0x4, offset = 0x4, fixed_abs, tag = 'smem constant byte address 0x4 - core index']
  #allocation1 [shape = 'u32[144,128]{1,0:T(1,128)}', space=vmem, size = 0x12000, scoped, tag = 'internal scratch']
  %s0 = inlined_call_operand.vmem [shape: bf16[300,784], index: 0, kind: input, shape index: {}]
  %s1 = inlined_call_operand.vmem [shape: bf16[784,256], index: 1, kind: input, shape index: {}]
  %s2 = inlined_call_operand.vmem [shape: f32[1,256], index: 2, kind: input, shape index: {}]
  %s3 = inlined_call_operand.vmem [shape: bf16[256,256], index: 3, kind: input, shape index: {}]
  %s4 = inlined_call_operand.vmem [shape: f32[1,256], index: 4, kind: input, shape index: {}]
  %s5 = inlined_call_operand.vmem [shape: bf16[256,128], index: 5, kind: input, shape index: {}]
  %s6 = inlined_call_operand.vmem [shape: f32[1,128], index: 6, kind: input, shape index: {}]
  %s7 = inlined_call_operand.vmem [shape: f32[300,128], index: 7, kind: output, shape index: {}]
  %s8 = sld [smem:[#allocation0]]
  $region109: #{net_forward.1} parent=0
    _
  %s10 = ssub.s32 1, %s8
  %s11 = scalar_select 0, %s10, %s8
  $region1: #{net_forward.1} parent=0
    #allocation2 [shape = 'u8[131072]{0}', space=vmem, size = 0x20000, scoped, tag = 'output window, operand 0']
    loop: start=0, step=1, limit=5
    $region2: #{net_forward.1} parent=1 // loop_pre_header
      _
    $region3: #{net_forward.1} parent=1 // loop_header
      %s13 = sphi 0, %s17
      %p14 = scmp.ge.s32.totalorder %s13, 5
      %s23 = sphi 0, %s25
      %s26 = sphi 0, %s23
      %s27 = sphi 0, %s26
      %s43 = sphi 0, %s27
      %s47 = sphi 0, %s47
      %s49 = sphi 0, %s47
      %s50 = sphi 0, %s49
      %s64 = sphi 0, %s50
      %s68 = sphi 0, %s68
      %s70 = sphi 0, %s68
      %s71 = sphi 0, %s70
      %s85 = sphi 0, %s71
      %s89 = sphi 0, %s89
      %s91 = sphi 0, %s89
      %s92 = sphi 0, %s91
      %s106 = sphi 0, %s92
      %s110 = sphi 0, %s110
      %s112 = sphi 0, %s110
      %s113 = sphi 0, %s112
      %s127 = sphi 0, %s113
      %s131 = sphi 0, %s131
      %s133 = sphi 0, %s131
      %s134 = sphi 0, %s133
      %s148 = sphi 0, %s134
      %s152 = sphi 0, %s152
      %s154 = sphi 0, %s152
      %s155 = sphi 0, %s154
      %s169 = sphi 0, %s155
      %s175 = sphi 0, %s177
      %s178 = sphi 0, %s175
      %s179 = sphi 0, %s178
      %s195 = sphi 0, %s179
    $region4: #{net_forward.1} parent=1 // loop_header_branch
      %16 = sbr.rel (%p14) target = $region8
    $region5: #{net_forward.1} parent=1 // loop_body
      %s18 = ssub.s32 %s13, 1
      %s19 = ssub.s32 %s13, 2
      %s20 = sadd.s32 %s13, 1
      %s21 = ssub.s32 %s13, %s20
      %p22 = scmp.eq.s32.totalorder %s21, 0
      %s24 = sadd.s32 %s23, 1
      %s25 = scalar_select %p22, %s23, %s24
      %p28 = pneg %p22
      %p29 = scmp.eq.s32.totalorder %s13, 2
      %p30 = por %p28, %p29
      %p31 = scmp.ne.s32.totalorder %s23, %s26
      %p32 = scmp.eq.s32.totalorder %s13, 0
      %p33 = por %p31, %p32
      %p34 = scmp.ne.s32.totalorder %s23, %s26
      %p35 = scmp.eq.s32.totalorder %s18, 2
      %p36 = por %p34, %p35
      %p37 = scmp.ne.s32.totalorder %s26, %s27
      %p38 = scmp.eq.s32.totalorder %s18, 0
      %p39 = por %p37, %p38
      %p40 = scmp.ne.s32.totalorder %s26, %s27
      %p41 = scmp.eq.s32.totalorder %s19, 2
      %p42 = por %p40, %p41
      %p44 = scmp.ne.s32.totalorder %s27, %s43
      %p45 = scmp.eq.s32.totalorder %s19, 0
      %p46 = por %p44, %p45
      %s48 = sadd.s32 %s47, 1
      %p51 = scmp.eq.s32.totalorder %s13, 2
      %p52 = scmp.ne.s32.totalorder %s47, %s49
      %p53 = scmp.eq.s32.totalorder %s13, 0
      %p54 = por %p52, %p53
      %p55 = scmp.ne.s32.totalorder %s47, %s49
      %p56 = scmp.eq.s32.totalorder %s18, 2
      %p57 = por %p55, %p56
      %p58 = scmp.ne.s32.totalorder %s49, %s50
      %p59 = scmp.eq.s32.totalorder %s18, 0
      %p60 = por %p58, %p59
      %p61 = scmp.ne.s32.totalorder %s49, %s50
      %p62 = scmp.eq.s32.totalorder %s19, 2
      %p63 = por %p61, %p62
      %p65 = scmp.ne.s32.totalorder %s50, %s64
      %p66 = scmp.eq.s32.totalorder %s19, 0
      %p67 = por %p65, %p66
      %s69 = sadd.s32 %s68, 1
      %p72 = scmp.eq.s32.totalorder %s13, 2
      %p73 = scmp.ne.s32.totalorder %s68, %s70
      %p74 = scmp.eq.s32.totalorder %s13, 0
      %p75 = por %p73, %p74
      %p76 = scmp.ne.s32.totalorder %s68, %s70
      %p77 = scmp.eq.s32.totalorder %s18, 2
      %p78 = por %p76, %p77
      %p79 = scmp.ne.s32.totalorder %s70, %s71
      %p80 = scmp.eq.s32.totalorder %s18, 0
      %p81 = por %p79, %p80
      %p82 = scmp.ne.s32.totalorder %s70, %s71
      %p83 = scmp.eq.s32.totalorder %s19, 2
      %p84 = por %p82, %p83
      %p86 = scmp.ne.s32.totalorder %s71, %s85
      %p87 = scmp.eq.s32.totalorder %s19, 0
      %p88 = por %p86, %p87
      %s90 = sadd.s32 %s89, 1
      %p93 = scmp.eq.s32.totalorder %s13, 2
      %p94 = scmp.ne.s32.totalorder %s89, %s91
      %p95 = scmp.eq.s32.totalorder %s13, 0
      %p96 = por %p94, %p95
      %p97 = scmp.ne.s32.totalorder %s89, %s91
      %p98 = scmp.eq.s32.totalorder %s18, 2
      %p99 = por %p97, %p98
      %p100 = scmp.ne.s32.totalorder %s91, %s92
      %p101 = scmp.eq.s32.totalorder %s18, 0
      %p102 = por %p100, %p101
      %p103 = scmp.ne.s32.totalorder %s91, %s92
      %p104 = scmp.eq.s32.totalorder %s19, 2
      %p105 = por %p103, %p104
      %p107 = scmp.ne.s32.totalorder %s92, %s106
      %p108 = scmp.eq.s32.totalorder %s19, 0
      %p109 = por %p107, %p108
      %s111 = sadd.s32 %s110, 1
      %p114 = scmp.eq.s32.totalorder %s13, 2
      %p115 = scmp.ne.s32.totalorder %s110, %s112
      %p116 = scmp.eq.s32.totalorder %s13, 0
      %p117 = por %p115, %p116
      %p118 = scmp.ne.s32.totalorder %s110, %s112
      %p119 = scmp.eq.s32.totalorder %s18, 2
      %p120 = por %p118, %p119
      %p121 = scmp.ne.s32.totalorder %s112, %s113
      %p122 = scmp.eq.s32.totalorder %s18, 0
      %p123 = por %p121, %p122
      %p124 = scmp.ne.s32.totalorder %s112, %s113
      %p125 = scmp.eq.s32.totalorder %s19, 2
      %p126 = por %p124, %p125
      %p128 = scmp.ne.s32.totalorder %s113, %s127
      %p129 = scmp.eq.s32.totalorder %s19, 0
      %p130 = por %p128, %p129
      %s132 = sadd.s32 %s131, 1
      %p135 = scmp.eq.s32.totalorder %s13, 2
      %p136 = scmp.ne.s32.totalorder %s131, %s133
      %p137 = scmp.eq.s32.totalorder %s13, 0
      %p138 = por %p136, %p137
      %p139 = scmp.ne.s32.totalorder %s131, %s133
      %p140 = scmp.eq.s32.totalorder %s18, 2
      %p141 = por %p139, %p140
      %p142 = scmp.ne.s32.totalorder %s133, %s134
      %p143 = scmp.eq.s32.totalorder %s18, 0
      %p144 = por %p142, %p143
      %p145 = scmp.ne.s32.totalorder %s133, %s134
      %p146 = scmp.eq.s32.totalorder %s19, 2
      %p147 = por %p145, %p146
      %p149 = scmp.ne.s32.totalorder %s134, %s148
      %p150 = scmp.eq.s32.totalorder %s19, 0
      %p151 = por %p149, %p150
      %s153 = sadd.s32 %s152, 1
      %p156 = scmp.eq.s32.totalorder %s13, 2
      %p157 = scmp.ne.s32.totalorder %s152, %s154
      %p158 = scmp.eq.s32.totalorder %s13, 0
      %p159 = por %p157, %p158
      %p160 = scmp.ne.s32.totalorder %s152, %s154
      %p161 = scmp.eq.s32.totalorder %s18, 2
      %p162 = por %p160, %p161
      %p163 = scmp.ne.s32.totalorder %s154, %s155
      %p164 = scmp.eq.s32.totalorder %s18, 0
      %p165 = por %p163, %p164
      %p166 = scmp.ne.s32.totalorder %s154, %s155
      %p167 = scmp.eq.s32.totalorder %s19, 2
      %p168 = por %p166, %p167
      %p170 = scmp.ne.s32.totalorder %s155, %s169
      %p171 = scmp.eq.s32.totalorder %s19, 0
      %p172 = por %p170, %p171
      %s173 = ssub.s32 %s13, %s20
      %p174 = scmp.eq.s32.totalorder %s173, 0
      %s176 = sadd.s32 %s175, 1
      %s177 = scalar_select %p174, %s175, %s176
      %p180 = pneg %p174
      %p181 = scmp.eq.s32.totalorder %s13, 2
      %p182 = por %p180, %p181
      %p183 = scmp.ne.s32.totalorder %s175, %s178
      %p184 = scmp.eq.s32.totalorder %s13, 0
      %p185 = por %p183, %p184
      %p186 = scmp.ne.s32.totalorder %s175, %s178
      %p187 = scmp.eq.s32.totalorder %s18, 2
      %p188 = por %p186, %p187
      %p189 = scmp.ne.s32.totalorder %s178, %s179
      %p190 = scmp.eq.s32.totalorder %s18, 0
      %p191 = por %p189, %p190
      %p192 = scmp.ne.s32.totalorder %s178, %s179
      %p193 = scmp.eq.s32.totalorder %s19, 2
      %p194 = por %p192, %p193
      %p196 = scmp.ne.s32.totalorder %s179, %s195
      %p197 = scmp.eq.s32.totalorder %s19, 0
      %p198 = por %p196, %p197
      %p199 = scmp.le.s32.totalorder 1, %s13
      %p200 = scmp.lt.s32.totalorder %s13, 4
      %p201 = pnand %p199, %p200
      %p202 = pneg %p201
      // Predicated region
      $region9: #{net_forward.1} parent=5 // pred_check
        _
      $region10: #{net_forward.1} parent=5 // pred_check_branch
        %204 = sbr.rel (%p201) target = $region12
      $region11: #{net_forward.1} parent=5 // pred_region
        %s205 = ssub.s32 %s13, 1
        // Predicated region
        $region13: #{net_forward.1} parent=11 // pred_check
          %p206 = pneg %p60
        $region14: #{net_forward.1} parent=11 // pred_check_branch
          %208 = sbr.rel (%p206) target = $region16
        $region15: #{net_forward.1} parent=11 // pred_region
          _
        $region16: #{net_forward.1} parent=11 // pred_fallthru
          _
        // Predicated region
        $region17: #{net_forward.1} parent=11 // pred_check
          %p209 = pneg %p81
        $region18: #{net_forward.1} parent=11 // pred_check_branch
          %211 = sbr.rel (%p209) target = $region20
        $region19: #{net_forward.1} parent=11 // pred_region
          _
        $region20: #{net_forward.1} parent=11 // pred_fallthru
          _
        // Predicated region
        $region21: #{net_forward.1} parent=11 // pred_check
          %p212 = pneg %p102
        $region22: #{net_forward.1} parent=11 // pred_check_branch
          %214 = sbr.rel (%p212) target = $region24
        $region23: #{net_forward.1} parent=11 // pred_region
          _
        $region24: #{net_forward.1} parent=11 // pred_fallthru
          _
        // Predicated region
        $region25: #{net_forward.1} parent=11 // pred_check
          %p215 = pneg %p123
        $region26: #{net_forward.1} parent=11 // pred_check_branch
          %217 = sbr.rel (%p215) target = $region28
        $region27: #{net_forward.1} parent=11 // pred_region
          _
        $region28: #{net_forward.1} parent=11 // pred_fallthru
          _
        // Predicated region
        $region29: #{net_forward.1} parent=11 // pred_check
          %p218 = pneg %p144
        $region30: #{net_forward.1} parent=11 // pred_check_branch
          %220 = sbr.rel (%p218) target = $region32
        $region31: #{net_forward.1} parent=11 // pred_region
          _
        $region32: #{net_forward.1} parent=11 // pred_fallthru
          _
        // Predicated region
        $region33: #{net_forward.1} parent=11 // pred_check
          %p221 = pneg %p165
        $region34: #{net_forward.1} parent=11 // pred_check_branch
          %223 = sbr.rel (%p221) target = $region36
        $region35: #{net_forward.1} parent=11 // pred_region
          _
        $region36: #{net_forward.1} parent=11 // pred_fallthru
          _
      $region12: #{net_forward.1} parent=5 // pred_fallthru
        _
      %p224 = scmp.lt.s32.totalorder %s13, 3
      // Predicated region
      $region37: #{net_forward.1} parent=5 // pred_check
        %p225 = pneg %p224
      $region38: #{net_forward.1} parent=5 // pred_check_branch
        %227 = sbr.rel (%p225) target = $region40
      $region39: #{net_forward.1} parent=5 // pred_region
        // Predicated region
        $region41: #{net_forward.1} parent=39 // pred_check
          %p228 = pneg %p33
        $region42: #{net_forward.1} parent=39 // pred_check_branch
          %230 = sbr.rel (%p228) target = $region44
        $region43: #{net_forward.1} parent=39 // pred_region
          %s231 = smul.u32 16, %s13
          %s232 = ssub.s32 38, %s231
          %p233 = scmp.lt.s32.totalorder %s232, 16
          %s234 = scalar_select %p233, %s232, 16
          %s235 = smul.u32 64, %s234
          %s236 = smul.u32 %s235, 7
          %p237 = scmp.lt.s32.totalorder %s231, 37
          %s238 = scalar_select %p237, %s231, 37
          %s239 = smul.addr %s238, 7
          %s240 = smul.addr %s239, 4
          %s241 = scalar_lea.vmem %s0, %s240
          %s242 = smul.u32 16, %s13
          %s243 = ssub.s32 38, %s242
          %p244 = scmp.lt.s32.totalorder %s243, 16
          %s245 = scalar_select %p244, %s243, 16
          %s246 = smul.u32 64, %s245
          %s247 = smul.u32 %s246, 7
        $region44: #{net_forward.1} parent=39 // pred_fallthru
          _
      $region40: #{net_forward.1} parent=5 // pred_fallthru
        _
      %p248 = scmp.le.s32.totalorder 1, %s13
      %p249 = scmp.lt.s32.totalorder %s13, 4
      %p250 = pnand %p248, %p249
      %p251 = pneg %p250
      // Predicated region
      $region45: #{net_forward.1} parent=5 // pred_check
        _
      $region46: #{net_forward.1} parent=5 // pred_check_branch
        %253 = sbr.rel (%p250) target = $region48
      $region47: #{net_forward.1} parent=5 // pred_region
        %s254 = ssub.s32 %s13, 1
        %s255 = smul.u32 16, %s18
        %s256 = ssub.s32 38, %s255
        %p257 = scmp.lt.s32.totalorder %s256, 16
        %s258 = scalar_select %p257, %s256, 16
        %s259 = smul.u32 64, %s258
        %s260 = smul.u32 %s259, 7
        %p261 = scmp.lt.s32.totalorder %s255, 37
        %s262 = scalar_select %p261, %s255, 37
        %s263 = smul.addr %s262, 7
        %s264 = smul.addr %s263, 4
        %s265 = scalar_lea.vmem %s0, %s264
        %p266 = pneg %p39
        %p267 = pneg %p36
        %p268 = pneg %p60
        %p269 = pneg %p57
        %p270 = pneg %p81
        %p271 = pneg %p78
        %p272 = pneg %p102
        %p273 = pneg %p99
        %p274 = pneg %p123
        %p275 = pneg %p120
        %p276 = pneg %p144
        %p277 = pneg %p141
        %p278 = pneg %p165
        %p279 = pneg %p162
        %p280 = pneg %p191
        %p281 = pneg %p188
        %s282 = sand.u32 %s178, 1
        %s283 = sand.u32 %s178, 1
        %s284 = smul.addr %s283, 128
        %s285 = scalar_lea.vmem [#allocation2], %s284
        %s286 = smul.u32 16, %s18
        %s287 = ssub.s32 38, %s286
        %p288 = scmp.lt.s32.totalorder %s287, 16
        %s289 = scalar_select %p288, %s287, 16
        %s290 = smul.u32 64, %s289
        %s291 = smul.u32 %s290, 7
        %p292 = scmp.lt.s32.totalorder %s286, 37
        %s293 = scalar_select %p292, %s286, 37
        %s294 = smul.addr %s293, 7
        %s295 = smul.addr %s294, 4
        %s296 = scalar_lea.vmem %s0, %s295
        %s297 = smul.u32 16, %s18
        %s298 = ssub.s32 38, %s297
        %p299 = scmp.lt.s32.totalorder %s298, 16
        %s300 = scalar_select %p299, %s298, 16
        %s301 = smul.u32 64, %s300
        %s302 = smul.u32 %s301, 7
        %s303 = smul.u32 16, %s18
        %s304 = ssub.s32 38, %s303
        %p305 = scmp.lt.s32.totalorder %s304, 16
        %s306 = scalar_select %p305, %s304, 16
        %s307 = smul.u32 128, %s306
        %v309 = vld [vmem:[%s296] sm:$0xff]
        %v310 = vld [vmem:[%s296 + $0x8] sm:$0xff]
        %v311 = vld [vmem:[%s296 + $0x10] sm:$0xff]
        %v312 = vld [vmem:[%s296 + $0x18] sm:$0xf]
        %v313 = vld [vmem:[%s296 + $0x1c] sm:$0xff]
        %v314 = vld [vmem:[%s296 + $0x24] sm:$0xff]
        %v315 = vld [vmem:[%s296 + $0x2c] sm:$0xff]
        %v316 = vld [vmem:[%s296 + $0x34] sm:$0xf]
        %v317 = vld [vmem:[%s296 + $0x38] sm:$0xff]
        %v318 = vld [vmem:[%s296 + $0x40] sm:$0xff]
        %v319 = vld [vmem:[%s296 + $0x48] sm:$0xff]
        %v320 = vld [vmem:[%s296 + $0x50] sm:$0xf]
        %v321 = vld [vmem:[%s296 + $0x54] sm:$0xff]
        %v322 = vld [vmem:[%s296 + $0x5c] sm:$0xff]
        %v323 = vld [vmem:[%s296 + $0x64] sm:$0xff]
        %v324 = vld [vmem:[%s296 + $0x6c] sm:$0xf]
        %v325 = vld [vmem:[%s296 + $0x70] sm:$0xff]
        %v326 = vld [vmem:[%s296 + $0x78] sm:$0xff]
        %v327 = vld [vmem:[%s296 + $0x80] sm:$0xff]
        %v328 = vld [vmem:[%s296 + $0x88] sm:$0xf]
        %v329 = vld [vmem:[%s296 + $0x8c] sm:$0xff]
        %v330 = vld [vmem:[%s296 + $0x94] sm:$0xff]
        %v331 = vld [vmem:[%s296 + $0x9c] sm:$0xff]
        %v332 = vld [vmem:[%s296 + $0xa4] sm:$0xf]
        %v333 = vld [vmem:[%s296 + $0xa8] sm:$0xff]
        %v334 = vld [vmem:[%s296 + $0xb0] sm:$0xff]
        %v335 = vld [vmem:[%s296 + $0xb8] sm:$0xff]
        %v336 = vld [vmem:[%s296 + $0xc0] sm:$0xf]
        %v337 = vld [vmem:[%s296 + $0xc4] sm:$0xff]
        %v338 = vld [vmem:[%s296 + $0xcc] sm:$0xff]
        %v339 = vld [vmem:[%s296 + $0xd4] sm:$0xff]
        %v340 = vld [vmem:[%s296 + $0xdc] sm:$0xf]
        %v341 = vld [vmem:[%s296 + $0xe0] sm:$0xff]
        %v342 = vld [vmem:[%s296 + $0xe8] sm:$0xff]
        %v343 = vld [vmem:[%s296 + $0xf0] sm:$0xff]
        %v344 = vld [vmem:[%s296 + $0xf8] sm:$0xf]
        %v345 = vld [vmem:[%s296 + $0xfc] sm:$0xff]
        %v346 = vld [vmem:[%s296 + $0x104] sm:$0xff]
        %v347 = vld [vmem:[%s296 + $0x10c] sm:$0xff]
        %v348 = vld [vmem:[%s296 + $0x114] sm:$0xf]
        %v349 = vld [vmem:[%s296 + $0x118] sm:$0xff]
        %v350 = vld [vmem:[%s296 + $0x120] sm:$0xff]
        %v351 = vld [vmem:[%s296 + $0x128] sm:$0xff]
        %v352 = vld [vmem:[%s296 + $0x130] sm:$0xf]
        %v353 = vld [vmem:[%s296 + $0x134] sm:$0xff]
        %v354 = vld [vmem:[%s296 + $0x13c] sm:$0xff]
        %v355 = vld [vmem:[%s296 + $0x144] sm:$0xff]
        %v356 = vld [vmem:[%s296 + $0x14c] sm:$0xf]
        %v357 = vld [vmem:[%s296 + $0x150] sm:$0xff]
        %v358 = vld [vmem:[%s296 + $0x158] sm:$0xff]
        %v359 = vld [vmem:[%s296 + $0x160] sm:$0xff]
        %v360 = vld [vmem:[%s296 + $0x168] sm:$0xf]
        %v361 = vld [vmem:[%s296 + $0x16c] sm:$0xff]
        %v362 = vld [vmem:[%s296 + $0x174] sm:$0xff]
        %v363 = vld [vmem:[%s296 + $0x17c] sm:$0xff]
        %v364 = vld [vmem:[%s296 + $0x184] sm:$0xf]
        %v365 = vld [vmem:[%s296 + $0x188] sm:$0xff]
        %v366 = vld [vmem:[%s296 + $0x190] sm:$0xff]
        %v367 = vld [vmem:[%s296 + $0x198] sm:$0xff]
        %v368 = vld [vmem:[%s296 + $0x1a0] sm:$0xf]
        %v369 = vld [vmem:[%s296 + $0x1a4] sm:$0xff]
        %v370 = vld [vmem:[%s296 + $0x1ac] sm:$0xff]
        %v371 = vld [vmem:[%s296 + $0x1b4] sm:$0xff]
        %v372 = vld [vmem:[%s296 + $0x1bc] sm:$0xf]
        %v373 = vld [vmem:[%s1] sm:$0xff]
        %v374 = vld [vmem:[%s1 + $0x8] sm:$0xff]
        %v375 = vld [vmem:[%s1 + $0x10] sm:$0xff]
        %v376 = vld [vmem:[%s1 + $0x18] sm:$0xff]
        %v377 = vld [vmem:[%s1 + $0x20] sm:$0xff]
        %v378 = vld [vmem:[%s1 + $0x28] sm:$0xff]
        %v379 = vld [vmem:[%s1 + $0x30] sm:$0xff]
        %v380 = vld [vmem:[%s1 + $0x38] sm:$0xff]
        %v381 = vld [vmem:[%s1 + $0x40] sm:$0xff]
        %v382 = vld [vmem:[%s1 + $0x48] sm:$0xff]
        %v383 = vld [vmem:[%s1 + $0x50] sm:$0xff]
        %v384 = vld [vmem:[%s1 + $0x58] sm:$0xff]
        %v385 = vld [vmem:[%s1 + $0x60] sm:$0xff]
        %v386 = vld [vmem:[%s1 + $0x68] sm:$0xff]
        %v387 = vld [vmem:[%s1 + $0x70] sm:$0xff]
        %v388 = vld [vmem:[%s1 + $0x78] sm:$0xff]
        %v389 = vld [vmem:[%s1 + $0x80] sm:$0xff]
        %v390 = vld [vmem:[%s1 + $0x88] sm:$0xff]
        %v391 = vld [vmem:[%s1 + $0x90] sm:$0xff]
        %v392 = vld [vmem:[%s1 + $0x98] sm:$0xff]
        %v393 = vld [vmem:[%s1 + $0xa0] sm:$0xff]
        %v394 = vld [vmem:[%s1 + $0xa8] sm:$0xff]
        %v395 = vld [vmem:[%s1 + $0xb0] sm:$0xff]
        %v396 = vld [vmem:[%s1 + $0xb8] sm:$0xff]
        %v397 = vld [vmem:[%s1 + $0xc0] sm:$0xff]
        %v398 = vld [vmem:[%s1 + $0xc8] sm:$0xff]
        %v399 = vld [vmem:[%s1 + $0xd0] sm:$0xff]
        %v400 = vld [vmem:[%s1 + $0xd8] sm:$0xff]
        %v401 = vld [vmem:[%s1 + $0xe0] sm:$0xff]
        %v402 = vld [vmem:[%s1 + $0xe8] sm:$0xff]
        %v403 = vld [vmem:[%s1 + $0xf0] sm:$0xff]
        %v404 = vld [vmem:[%s1 + $0xf8] sm:$0xff]
        %v405 = vld [vmem:[%s1 + $0x100] sm:$0xff]
        %v406 = vld [vmem:[%s1 + $0x108] sm:$0xff]
        %v407 = vld [vmem:[%s1 + $0x110] sm:$0xff]
        %v408 = vld [vmem:[%s1 + $0x118] sm:$0xff]
        %v409 = vld [vmem:[%s1 + $0x120] sm:$0xff]
        %v410 = vld [vmem:[%s1 + $0x128] sm:$0xff]
        %v411 = vld [vmem:[%s1 + $0x130] sm:$0xff]
        %v412 = vld [vmem:[%s1 + $0x138] sm:$0xff]
        %v413 = vld [vmem:[%s1 + $0x140] sm:$0xff]
        %v414 = vld [vmem:[%s1 + $0x148] sm:$0xff]
        %v415 = vld [vmem:[%s1 + $0x150] sm:$0xff]
        %v416 = vld [vmem:[%s1 + $0x158] sm:$0xff]
        %v417 = vld [vmem:[%s1 + $0x160] sm:$0xff]
        %v418 = vld [vmem:[%s1 + $0x168] sm:$0xff]
        %v419 = vld [vmem:[%s1 + $0x170] sm:$0xff]
        %v420 = vld [vmem:[%s1 + $0x178] sm:$0xff]
        %v421 = vld [vmem:[%s1 + $0x180] sm:$0xff]
        %v422 = vld [vmem:[%s1 + $0x188] sm:$0xff]
        %v423 = vld [vmem:[%s1 + $0x190] sm:$0xff]
        %v424 = vld [vmem:[%s1 + $0x198] sm:$0xff]
        %v425 = vld [vmem:[%s1 + $0x1a0] sm:$0xff]
        %v426 = vld [vmem:[%s1 + $0x1a8] sm:$0xff]
        %v427 = vld [vmem:[%s1 + $0x1b0] sm:$0xff]
        %v428 = vld [vmem:[%s1 + $0x1b8] sm:$0xff]
        %v429 = vld [vmem:[%s1 + $0x1c0] sm:$0xff]
        %v430 = vld [vmem:[%s1 + $0x1c8] sm:$0xff]
        %v431 = vld [vmem:[%s1 + $0x1d0] sm:$0xff]
        %v432 = vld [vmem:[%s1 + $0x1d8] sm:$0xff]
        %v433 = vld [vmem:[%s1 + $0x1e0] sm:$0xff]
        %v434 = vld [vmem:[%s1 + $0x1e8] sm:$0xff]
        %v435 = vld [vmem:[%s1 + $0x1f0] sm:$0xff]
        %v436 = vld [vmem:[%s1 + $0x1f8] sm:$0xff]
        %v437 = vld [vmem:[%s1 + $0x200] sm:$0xff]
        %v438 = vld [vmem:[%s1 + $0x208] sm:$0xff]
        %v439 = vld [vmem:[%s1 + $0x210] sm:$0xff]
        %v440 = vld [vmem:[%s1 + $0x218] sm:$0xff]
        %v441 = vld [vmem:[%s1 + $0x220] sm:$0xff]
        %v442 = vld [vmem:[%s1 + $0x228] sm:$0xff]
        %v443 = vld [vmem:[%s1 + $0x230] sm:$0xff]
        %v444 = vld [vmem:[%s1 + $0x238] sm:$0xff]
        %v445 = vld [vmem:[%s1 + $0x240] sm:$0xff]
        %v446 = vld [vmem:[%s1 + $0x248] sm:$0xff]
        %v447 = vld [vmem:[%s1 + $0x250] sm:$0xff]
        %v448 = vld [vmem:[%s1 + $0x258] sm:$0xff]
        %v449 = vld [vmem:[%s1 + $0x260] sm:$0xff]
        %v450 = vld [vmem:[%s1 + $0x268] sm:$0xff]
        %v451 = vld [vmem:[%s1 + $0x270] sm:$0xff]
        %v452 = vld [vmem:[%s1 + $0x278] sm:$0xff]
        %v453 = vld [vmem:[%s1 + $0x280] sm:$0xff]
        %v454 = vld [vmem:[%s1 + $0x288] sm:$0xff]
        %v455 = vld [vmem:[%s1 + $0x290] sm:$0xff]
        %v456 = vld [vmem:[%s1 + $0x298] sm:$0xff]
        %v457 = vld [vmem:[%s1 + $0x2a0] sm:$0xff]
        %v458 = vld [vmem:[%s1 + $0x2a8] sm:$0xff]
        %v459 = vld [vmem:[%s1 + $0x2b0] sm:$0xff]
        %v460 = vld [vmem:[%s1 + $0x2b8] sm:$0xff]
        %v461 = vld [vmem:[%s1 + $0x2c0] sm:$0xff]
        %v462 = vld [vmem:[%s1 + $0x2c8] sm:$0xff]
        %v463 = vld [vmem:[%s1 + $0x2d0] sm:$0xff]
        %v464 = vld [vmem:[%s1 + $0x2d8] sm:$0xff]
        %v465 = vld [vmem:[%s1 + $0x2e0] sm:$0xff]
        %v466 = vld [vmem:[%s1 + $0x2e8] sm:$0xff]
        %v467 = vld [vmem:[%s1 + $0x2f0] sm:$0xff]
        %v468 = vld [vmem:[%s1 + $0x2f8] sm:$0xff]
        %v469 = vld [vmem:[%s1 + $0x300] sm:$0xff]
        %v470 = vld [vmem:[%s1 + $0x308] sm:$0xff]
        %v471 = vld [vmem:[%s2] sm:$0x3]
        %v473 = vlaneseq
        %v474 = vshrl.u32 %v473, 7
        %v475 = vsub.s32 0, %v474
        %v476 = vrot.slane %v471, %v475
        %v477 = vlaneseq
        %v478 = vshrl.u32 %v477, 7
        %v479 = vsub.s32 1, %v478
        %v480 = vrot.slane %v471, %v479
        %v547 = vunpack.c.l.b16 %v309
        %v548 = vunpack.c.h.b16 %v309
        %v549 = vunpack.c.l.b16 %v310
        %v550 = vunpack.c.h.b16 %v310
        %v551 = vunpack.c.l.b16 %v311
        %v552 = vunpack.c.h.b16 %v311
        %v553 = vunpack.c.l.b16 %v312
        %v554 = vunpack.c.l.b16 %v313
        %v555 = vunpack.c.h.b16 %v313
        %v556 = vunpack.c.l.b16 %v314
        %v557 = vunpack.c.h.b16 %v314
        %v558 = vunpack.c.l.b16 %v315
        %v559 = vunpack.c.h.b16 %v315
        %v560 = vunpack.c.l.b16 %v316
        %v561 = vunpack.c.l.b16 %v317
        %v562 = vunpack.c.h.b16 %v317
        %v563 = vunpack.c.l.b16 %v318
        %v564 = vunpack.c.h.b16 %v318
        %v565 = vunpack.c.l.b16 %v319
        %v566 = vunpack.c.h.b16 %v319
        %v567 = vunpack.c.l.b16 %v320
        %v568 = vunpack.c.l.b16 %v321
        %v569 = vunpack.c.h.b16 %v321
        %v570 = vunpack.c.l.b16 %v322
        %v571 = vunpack.c.h.b16 %v322
        %v572 = vunpack.c.l.b16 %v323
        %v573 = vunpack.c.h.b16 %v323
        %v574 = vunpack.c.l.b16 %v324
        %v575 = vunpack.c.l.b16 %v325
        %v576 = vunpack.c.h.b16 %v325
        %v577 = vunpack.c.l.b16 %v326
        %v578 = vunpack.c.h.b16 %v326
        %v579 = vunpack.c.l.b16 %v327
        %v580 = vunpack.c.h.b16 %v327
        %v581 = vunpack.c.l.b16 %v328
        %v582 = vunpack.c.l.b16 %v329
        %v583 = vunpack.c.h.b16 %v329
        %v584 = vunpack.c.l.b16 %v330
        %v585 = vunpack.c.h.b16 %v330
        %v586 = vunpack.c.l.b16 %v331
        %v587 = vunpack.c.h.b16 %v331
        %v588 = vunpack.c.l.b16 %v332
        %v589 = vunpack.c.l.b16 %v333
        %v590 = vunpack.c.h.b16 %v333
        %v591 = vunpack.c.l.b16 %v334
        %v592 = vunpack.c.h.b16 %v334
        %v593 = vunpack.c.l.b16 %v335
        %v594 = vunpack.c.h.b16 %v335
        %v595 = vunpack.c.l.b16 %v336
        %v596 = vunpack.c.l.b16 %v337
        %v597 = vunpack.c.h.b16 %v337
        %v598 = vunpack.c.l.b16 %v338
        %v599 = vunpack.c.h.b16 %v338
        %v600 = vunpack.c.l.b16 %v339
        %v601 = vunpack.c.h.b16 %v339
        %v602 = vunpack.c.l.b16 %v340
        %v603 = vunpack.c.l.b16 %v341
        %v604 = vunpack.c.h.b16 %v341
        %v605 = vunpack.c.l.b16 %v342
        %v606 = vunpack.c.h.b16 %v342
        %v607 = vunpack.c.l.b16 %v343
        %v608 = vunpack.c.h.b16 %v343
        %v609 = vunpack.c.l.b16 %v344
        %v610 = vunpack.c.l.b16 %v345
        %v611 = vunpack.c.h.b16 %v345
        %v612 = vunpack.c.l.b16 %v346
        %v613 = vunpack.c.h.b16 %v346
        %v614 = vunpack.c.l.b16 %v347
        %v615 = vunpack.c.h.b16 %v347
        %v616 = vunpack.c.l.b16 %v348
        %v617 = vunpack.c.l.b16 %v349
        %v618 = vunpack.c.h.b16 %v349
        %v619 = vunpack.c.l.b16 %v350
        %v620 = vunpack.c.h.b16 %v350
        %v621 = vunpack.c.l.b16 %v351
        %v622 = vunpack.c.h.b16 %v351
        %v623 = vunpack.c.l.b16 %v352
        %v624 = vunpack.c.l.b16 %v353
        %v625 = vunpack.c.h.b16 %v353
        %v626 = vunpack.c.l.b16 %v354
        %v627 = vunpack.c.h.b16 %v354
        %v628 = vunpack.c.l.b16 %v355
        %v629 = vunpack.c.h.b16 %v355
        %v630 = vunpack.c.l.b16 %v356
        %v631 = vunpack.c.l.b16 %v357
        %v632 = vunpack.c.h.b16 %v357
        %v633 = vunpack.c.l.b16 %v358
        %v634 = vunpack.c.h.b16 %v358
        %v635 = vunpack.c.l.b16 %v359
        %v636 = vunpack.c.h.b16 %v359
        %v637 = vunpack.c.l.b16 %v360
        %v638 = vunpack.c.l.b16 %v361
        %v639 = vunpack.c.h.b16 %v361
        %v640 = vunpack.c.l.b16 %v362
        %v641 = vunpack.c.h.b16 %v362
        %v642 = vunpack.c.l.b16 %v363
        %v643 = vunpack.c.h.b16 %v363
        %v644 = vunpack.c.l.b16 %v364
        %v645 = vunpack.c.l.b16 %v365
        %v646 = vunpack.c.h.b16 %v365
        %v647 = vunpack.c.l.b16 %v366
        %v648 = vunpack.c.h.b16 %v366
        %v649 = vunpack.c.l.b16 %v367
        %v650 = vunpack.c.h.b16 %v367
        %v651 = vunpack.c.l.b16 %v368
        %v652 = vunpack.c.l.b16 %v369
        %v653 = vunpack.c.h.b16 %v369
        %v654 = vunpack.c.l.b16 %v370
        %v655 = vunpack.c.h.b16 %v370
        %v656 = vunpack.c.l.b16 %v371
        %v657 = vunpack.c.h.b16 %v371
        %v658 = vunpack.c.l.b16 %v372
        %v659 = vpack.c.b16 %v554, %v547
        %v660 = vpack.c.b16 %v555, %v548
        %v661 = vpack.c.b16 %v556, %v549
        %v662 = vpack.c.b16 %v557, %v550
        %v663 = vpack.c.b16 %v558, %v551
        %v664 = vpack.c.b16 %v559, %v552
        %v665 = vpack.c.b16 %v560, %v553
        %v666 = vpack.c.b16 %v568, %v561
        %v667 = vpack.c.b16 %v569, %v562
        %v668 = vpack.c.b16 %v570, %v563
        %v669 = vpack.c.b16 %v571, %v564
        %v670 = vpack.c.b16 %v572, %v565
        %v671 = vpack.c.b16 %v573, %v566
        %v672 = vpack.c.b16 %v574, %v567
        %v673 = vpack.c.b16 %v582, %v575
        %v674 = vpack.c.b16 %v583, %v576
        %v675 = vpack.c.b16 %v584, %v577
        %v676 = vpack.c.b16 %v585, %v578
        %v677 = vpack.c.b16 %v586, %v579
        %v678 = vpack.c.b16 %v587, %v580
        %v679 = vpack.c.b16 %v588, %v581
        %v680 = vpack.c.b16 %v596, %v589
        %v681 = vpack.c.b16 %v597, %v590
        %v682 = vpack.c.b16 %v598, %v591
        %v683 = vpack.c.b16 %v599, %v592
        %v684 = vpack.c.b16 %v600, %v593
        %v685 = vpack.c.b16 %v601, %v594
        %v686 = vpack.c.b16 %v602, %v595
        %v687 = vpack.c.b16 %v610, %v603
        %v688 = vpack.c.b16 %v611, %v604
        %v689 = vpack.c.b16 %v612, %v605
        %v690 = vpack.c.b16 %v613, %v606
        %v691 = vpack.c.b16 %v614, %v607
        %v692 = vpack.c.b16 %v615, %v608
        %v693 = vpack.c.b16 %v616, %v609
        %v694 = vpack.c.b16 %v624, %v617
        %v695 = vpack.c.b16 %v625, %v618
        %v696 = vpack.c.b16 %v626, %v619
        %v697 = vpack.c.b16 %v627, %v620
        %v698 = vpack.c.b16 %v628, %v621
        %v699 = vpack.c.b16 %v629, %v622
        %v700 = vpack.c.b16 %v630, %v623
        %v701 = vpack.c.b16 %v638, %v631
        %v702 = vpack.c.b16 %v639, %v632
        %v703 = vpack.c.b16 %v640, %v633
        %v704 = vpack.c.b16 %v641, %v634
        %v705 = vpack.c.b16 %v642, %v635
        %v706 = vpack.c.b16 %v643, %v636
        %v707 = vpack.c.b16 %v644, %v637
        %v708 = vpack.c.b16 %v652, %v645
        %v709 = vpack.c.b16 %v653, %v646
        %v710 = vpack.c.b16 %v654, %v647
        %v711 = vpack.c.b16 %v655, %v648
        %v712 = vpack.c.b16 %v656, %v649
        %v713 = vpack.c.b16 %v657, %v650
        %v714 = vpack.c.b16 %v658, %v651
        %v861 = vunpack.c.l.b16 %v373
        %v862 = vunpack.c.h.b16 %v373
        %v863 = vunpack.c.l.b16 %v374
        %v864 = vunpack.c.h.b16 %v374
        %v865 = vunpack.c.l.b16 %v375
        %v866 = vunpack.c.h.b16 %v375
        %v867 = vunpack.c.l.b16 %v376
        %v868 = vunpack.c.h.b16 %v376
        %v869 = vunpack.c.l.b16 %v377
        %v870 = vunpack.c.h.b16 %v377
        %v871 = vunpack.c.l.b16 %v378
        %v872 = vunpack.c.h.b16 %v378
        %v873 = vunpack.c.l.b16 %v379
        %v874 = vunpack.c.h.b16 %v379
        %v875 = vunpack.c.l.b16 %v380
        %v876 = vunpack.c.h.b16 %v380
        %v877 = vunpack.c.l.b16 %v381
        %v878 = vunpack.c.h.b16 %v381
        %v879 = vunpack.c.l.b16 %v382
        %v880 = vunpack.c.h.b16 %v382
        %v881 = vunpack.c.l.b16 %v383
        %v882 = vunpack.c.h.b16 %v383
        %v883 = vunpack.c.l.b16 %v384
        %v884 = vunpack.c.h.b16 %v384
        %v885 = vunpack.c.l.b16 %v385
        %v886 = vunpack.c.h.b16 %v385
        %v887 = vunpack.c.l.b16 %v386
        %v888 = vunpack.c.h.b16 %v386
        %v889 = vunpack.c.l.b16 %v387
        %v890 = vunpack.c.h.b16 %v387
        %v891 = vunpack.c.l.b16 %v388
        %v892 = vunpack.c.h.b16 %v388
        %v893 = vunpack.c.l.b16 %v389
        %v894 = vunpack.c.h.b16 %v389
        %v895 = vunpack.c.l.b16 %v390
        %v896 = vunpack.c.h.b16 %v390
        %v897 = vunpack.c.l.b16 %v391
        %v898 = vunpack.c.h.b16 %v391
        %v899 = vunpack.c.l.b16 %v392
        %v900 = vunpack.c.h.b16 %v392
        %v901 = vunpack.c.l.b16 %v393
        %v902 = vunpack.c.h.b16 %v393
        %v903 = vunpack.c.l.b16 %v394
        %v904 = vunpack.c.h.b16 %v394
        %v905 = vunpack.c.l.b16 %v395
        %v906 = vunpack.c.h.b16 %v395
        %v907 = vunpack.c.l.b16 %v396
        %v908 = vunpack.c.h.b16 %v396
        %v909 = vunpack.c.l.b16 %v397
        %v910 = vunpack.c.h.b16 %v397
        %v911 = vunpack.c.l.b16 %v398
        %v912 = vunpack.c.h.b16 %v398
        %v913 = vunpack.c.l.b16 %v399
        %v914 = vunpack.c.h.b16 %v399
        %v915 = vunpack.c.l.b16 %v400
        %v916 = vunpack.c.h.b16 %v400
        %v917 = vunpack.c.l.b16 %v401
        %v918 = vunpack.c.h.b16 %v401
        %v919 = vunpack.c.l.b16 %v402
        %v920 = vunpack.c.h.b16 %v402
        %v921 = vunpack.c.l.b16 %v403
        %v922 = vunpack.c.h.b16 %v403
        %v923 = vunpack.c.l.b16 %v404
        %v924 = vunpack.c.h.b16 %v404
        %v925 = vunpack.c.l.b16 %v405
        %v926 = vunpack.c.h.b16 %v405
        %v927 = vunpack.c.l.b16 %v406
        %v928 = vunpack.c.h.b16 %v406
        %v929 = vunpack.c.l.b16 %v407
        %v930 = vunpack.c.h.b16 %v407
        %v931 = vunpack.c.l.b16 %v408
        %v932 = vunpack.c.h.b16 %v408
        %v933 = vunpack.c.l.b16 %v409
        %v934 = vunpack.c.h.b16 %v409
        %v935 = vunpack.c.l.b16 %v410
        %v936 = vunpack.c.h.b16 %v410
        %v937 = vunpack.c.l.b16 %v411
        %v938 = vunpack.c.h.b16 %v411
        %v939 = vunpack.c.l.b16 %v412
        %v940 = vunpack.c.h.b16 %v412
        %v941 = vunpack.c.l.b16 %v413
        %v942 = vunpack.c.h.b16 %v413
        %v943 = vunpack.c.l.b16 %v414
        %v944 = vunpack.c.h.b16 %v414
        %v945 = vunpack.c.l.b16 %v415
        %v946 = vunpack.c.h.b16 %v415
        %v947 = vunpack.c.l.b16 %v416
        %v948 = vunpack.c.h.b16 %v416
        %v949 = vunpack.c.l.b16 %v417
        %v950 = vunpack.c.h.b16 %v417
        %v951 = vunpack.c.l.b16 %v418
        %v952 = vunpack.c.h.b16 %v418
        %v953 = vunpack.c.l.b16 %v419
        %v954 = vunpack.c.h.b16 %v419
        %v955 = vunpack.c.l.b16 %v420
        %v956 = vunpack.c.h.b16 %v420
        %v957 = vunpack.c.l.b16 %v421
        %v958 = vunpack.c.h.b16 %v421
        %v959 = vunpack.c.l.b16 %v422
        %v960 = vunpack.c.h.b16 %v422
        %v961 = vunpack.c.l.b16 %v423
        %v962 = vunpack.c.h.b16 %v423
        %v963 = vunpack.c.l.b16 %v424
        %v964 = vunpack.c.h.b16 %v424
        %v965 = vunpack.c.l.b16 %v425
        %v966 = vunpack.c.h.b16 %v425
        %v967 = vunpack.c.l.b16 %v426
        %v968 = vunpack.c.h.b16 %v426
        %v969 = vunpack.c.l.b16 %v427
        %v970 = vunpack.c.h.b16 %v427
        %v971 = vunpack.c.l.b16 %v428
        %v972 = vunpack.c.h.b16 %v428
        %v973 = vunpack.c.l.b16 %v429
        %v974 = vunpack.c.h.b16 %v429
        %v975 = vunpack.c.l.b16 %v430
        %v976 = vunpack.c.h.b16 %v430
        %v977 = vunpack.c.l.b16 %v431
        %v978 = vunpack.c.h.b16 %v431
        %v979 = vunpack.c.l.b16 %v432
        %v980 = vunpack.c.h.b16 %v432
        %v981 = vunpack.c.l.b16 %v433
        %v982 = vunpack.c.h.b16 %v433
        %v983 = vunpack.c.l.b16 %v434
        %v984 = vunpack.c.h.b16 %v434
        %v985 = vunpack.c.l.b16 %v435
        %v986 = vunpack.c.h.b16 %v435
        %v987 = vunpack.c.l.b16 %v436
        %v988 = vunpack.c.h.b16 %v436
        %v989 = vunpack.c.l.b16 %v437
        %v990 = vunpack.c.h.b16 %v437
        %v991 = vunpack.c.l.b16 %v438
        %v992 = vunpack.c.h.b16 %v438
        %v993 = vunpack.c.l.b16 %v439
        %v994 = vunpack.c.h.b16 %v439
        %v995 = vunpack.c.l.b16 %v440
        %v996 = vunpack.c.h.b16 %v440
        %v997 = vunpack.c.l.b16 %v441
        %v998 = vunpack.c.h.b16 %v441
        %v999 = vunpack.c.l.b16 %v442
        %v1000 = vunpack.c.h.b16 %v442
        %v1001 = vunpack.c.l.b16 %v443
        %v1002 = vunpack.c.h.b16 %v443
        %v1003 = vunpack.c.l.b16 %v444
        %v1004 = vunpack.c.h.b16 %v444
        %v1005 = vunpack.c.l.b16 %v445
        %v1006 = vunpack.c.h.b16 %v445
        %v1007 = vunpack.c.l.b16 %v446
        %v1008 = vunpack.c.h.b16 %v446
        %v1009 = vunpack.c.l.b16 %v447
        %v1010 = vunpack.c.h.b16 %v447
        %v1011 = vunpack.c.l.b16 %v448
        %v1012 = vunpack.c.h.b16 %v448
        %v1013 = vunpack.c.l.b16 %v449
        %v1014 = vunpack.c.h.b16 %v449
        %v1015 = vunpack.c.l.b16 %v450
        %v1016 = vunpack.c.h.b16 %v450
        %v1017 = vunpack.c.l.b16 %v451
        %v1018 = vunpack.c.h.b16 %v451
        %v1019 = vunpack.c.l.b16 %v452
        %v1020 = vunpack.c.h.b16 %v452
        %v1021 = vunpack.c.l.b16 %v453
        %v1022 = vunpack.c.h.b16 %v453
        %v1023 = vunpack.c.l.b16 %v454
        %v1024 = vunpack.c.h.b16 %v454
        %v1025 = vunpack.c.l.b16 %v455
        %v1026 = vunpack.c.h.b16 %v455
        %v1027 = vunpack.c.l.b16 %v456
        %v1028 = vunpack.c.h.b16 %v456
        %v1029 = vunpack.c.l.b16 %v457
        %v1030 = vunpack.c.h.b16 %v457
        %v1031 = vunpack.c.l.b16 %v458
        %v1032 = vunpack.c.h.b16 %v458
        %v1033 = vunpack.c.l.b16 %v459
        %v1034 = vunpack.c.h.b16 %v459
        %v1035 = vunpack.c.l.b16 %v460
        %v1036 = vunpack.c.h.b16 %v460
        %v1037 = vunpack.c.l.b16 %v461
        %v1038 = vunpack.c.h.b16 %v461
        %v1039 = vunpack.c.l.b16 %v462
        %v1040 = vunpack.c.h.b16 %v462
        %v1041 = vunpack.c.l.b16 %v463
        %v1042 = vunpack.c.h.b16 %v463
        %v1043 = vunpack.c.l.b16 %v464
        %v1044 = vunpack.c.h.b16 %v464
        %v1045 = vunpack.c.l.b16 %v465
        %v1046 = vunpack.c.h.b16 %v465
        %v1047 = vunpack.c.l.b16 %v466
        %v1048 = vunpack.c.h.b16 %v466
        %v1049 = vunpack.c.l.b16 %v467
        %v1050 = vunpack.c.h.b16 %v467
        %v1051 = vunpack.c.l.b16 %v468
        %v1052 = vunpack.c.h.b16 %v468
        %v1053 = vunpack.c.l.b16 %v469
        %v1054 = vunpack.c.h.b16 %v469
        %v1055 = vunpack.c.l.b16 %v470
        %v1056 = vunpack.c.h.b16 %v470
        %v1057 = vpack.c.b16 %v863, %v861
        %v1058 = vpack.c.b16 %v864, %v862
        %v1059 = vpack.c.b16 %v867, %v865
        %v1060 = vpack.c.b16 %v868, %v866
        %v1061 = vpack.c.b16 %v871, %v869
        %v1062 = vpack.c.b16 %v872, %v870
        %v1063 = vpack.c.b16 %v875, %v873
        %v1064 = vpack.c.b16 %v876, %v874
        %v1065 = vpack.c.b16 %v879, %v877
        %v1066 = vpack.c.b16 %v880, %v878
        %v1067 = vpack.c.b16 %v883, %v881
        %v1068 = vpack.c.b16 %v884, %v882
        %v1069 = vpack.c.b16 %v887, %v885
        %v1070 = vpack.c.b16 %v888, %v886
        %v1071 = vpack.c.b16 %v891, %v889
        %v1072 = vpack.c.b16 %v892, %v890
        %v1073 = vpack.c.b16 %v895, %v893
        %v1074 = vpack.c.b16 %v896, %v894
        %v1075 = vpack.c.b16 %v899, %v897
        %v1076 = vpack.c.b16 %v900, %v898
        %v1077 = vpack.c.b16 %v903, %v901
        %v1078 = vpack.c.b16 %v904, %v902
        %v1079 = vpack.c.b16 %v907, %v905
        %v1080 = vpack.c.b16 %v908, %v906
        %v1081 = vpack.c.b16 %v911, %v909
        %v1082 = vpack.c.b16 %v912, %v910
        %v1083 = vpack.c.b16 %v915, %v913
        %v1084 = vpack.c.b16 %v916, %v914
        %v1085 = vpack.c.b16 %v919, %v917
        %v1086 = vpack.c.b16 %v920, %v918
        %v1087 = vpack.c.b16 %v923, %v921
        %v1088 = vpack.c.b16 %v924, %v922
        %v1089 = vpack.c.b16 %v927, %v925
        %v1090 = vpack.c.b16 %v928, %v926
        %v1091 = vpack.c.b16 %v931, %v929
        %v1092 = vpack.c.b16 %v932, %v930
        %v1093 = vpack.c.b16 %v935, %v933
        %v1094 = vpack.c.b16 %v936, %v934
        %v1095 = vpack.c.b16 %v939, %v937
        %v1096 = vpack.c.b16 %v940, %v938
        %v1097 = vpack.c.b16 %v943, %v941
        %v1098 = vpack.c.b16 %v944, %v942
        %v1099 = vpack.c.b16 %v947, %v945
        %v1100 = vpack.c.b16 %v948, %v946
        %v1101 = vpack.c.b16 %v951, %v949
        %v1102 = vpack.c.b16 %v952, %v950
        %v1103 = vpack.c.b16 %v955, %v953
        %v1104 = vpack.c.b16 %v956, %v954
        %v1105 = vpack.c.b16 %v959, %v957
        %v1106 = vpack.c.b16 %v960, %v958
        %v1107 = vpack.c.b16 %v963, %v961
        %v1108 = vpack.c.b16 %v964, %v962
        %v1109 = vpack.c.b16 %v967, %v965
        %v1110 = vpack.c.b16 %v968, %v966
        %v1111 = vpack.c.b16 %v971, %v969
        %v1112 = vpack.c.b16 %v972, %v970
        %v1113 = vpack.c.b16 %v975, %v973
        %v1114 = vpack.c.b16 %v976, %v974
        %v1115 = vpack.c.b16 %v979, %v977
        %v1116 = vpack.c.b16 %v980, %v978
        %v1117 = vpack.c.b16 %v983, %v981
        %v1118 = vpack.c.b16 %v984, %v982
        %v1119 = vpack.c.b16 %v987, %v985
        %v1120 = vpack.c.b16 %v988, %v986
        %v1121 = vpack.c.b16 %v991, %v989
        %v1122 = vpack.c.b16 %v992, %v990
        %v1123 = vpack.c.b16 %v995, %v993
        %v1124 = vpack.c.b16 %v996, %v994
        %v1125 = vpack.c.b16 %v999, %v997
        %v1126 = vpack.c.b16 %v1000, %v998
        %v1127 = vpack.c.b16 %v1003, %v1001
        %v1128 = vpack.c.b16 %v1004, %v1002
        %v1129 = vpack.c.b16 %v1007, %v1005
        %v1130 = vpack.c.b16 %v1008, %v1006
        %v1131 = vpack.c.b16 %v1011, %v1009
        %v1132 = vpack.c.b16 %v1012, %v1010
        %v1133 = vpack.c.b16 %v1015, %v1013
        %v1134 = vpack.c.b16 %v1016, %v1014
        %v1135 = vpack.c.b16 %v1019, %v1017
        %v1136 = vpack.c.b16 %v1020, %v1018
        %v1137 = vpack.c.b16 %v1023, %v1021
        %v1138 = vpack.c.b16 %v1024, %v1022
        %v1139 = vpack.c.b16 %v1027, %v1025
        %v1140 = vpack.c.b16 %v1028, %v1026
        %v1141 = vpack.c.b16 %v1031, %v1029
        %v1142 = vpack.c.b16 %v1032, %v1030
        %v1143 = vpack.c.b16 %v1035, %v1033
        %v1144 = vpack.c.b16 %v1036, %v1034
        %v1145 = vpack.c.b16 %v1039, %v1037
        %v1146 = vpack.c.b16 %v1040, %v1038
        %v1147 = vpack.c.b16 %v1043, %v1041
        %v1148 = vpack.c.b16 %v1044, %v1042
        %v1149 = vpack.c.b16 %v1047, %v1045
        %v1150 = vpack.c.b16 %v1048, %v1046
        %v1151 = vpack.c.b16 %v1051, %v1049
        %v1152 = vpack.c.b16 %v1052, %v1050
        %v1153 = vpack.c.b16 %v1055, %v1053
        %v1154 = vpack.c.b16 %v1056, %v1054
        %vm1253 = vcmask 130048
        %v1255 = vsel %vm1253, %v665, 0
        %v1258 = vsel %vm1253, %v672, 0
        %v1261 = vsel %vm1253, %v679, 0
        %v1264 = vsel %vm1253, %v686, 0
        %v1267 = vsel %vm1253, %v693, 0
        %v1270 = vsel %vm1253, %v700, 0
        %v1273 = vsel %vm1253, %v707, 0
        %v1276 = vsel %vm1253, %v714, 0
        %1278 = vmatprep.subr.bf16.mxu0 %v1072
        %1279 = vmatpush1.bf16.msra.mxu0 %v1071
        %1280 = vmatprep.subr.bf16.mxu0 %v1070
        %1281 = vmatpush1.bf16.msra.mxu0 %v1069
        %1282 = vmatprep.subr.bf16.mxu0 %v1068
        %1283 = vmatpush1.bf16.msra.mxu0 %v1067
        %1284 = vmatprep.subr.bf16.mxu0 %v1066
        %1285 = vmatpush1.bf16.msra.mxu0 %v1065
        %1286 = vmatprep.subr.bf16.mxu0 %v1064
        %1287 = vmatpush1.bf16.msra.mxu0 %v1063
        %1288 = vmatprep.subr.bf16.mxu0 %v1062
        %1289 = vmatpush1.bf16.msra.mxu0 %v1061
        %1290 = vmatprep.subr.bf16.mxu0 %v1060
        %1291 = vmatpush1.bf16.msra.mxu0 %v1059
        %1292 = vmatprep.subr.bf16.mxu0 %v1058
        %1293 = vmatpush1.bf16.msra.mxu0 %v1057
        %1294 = vmatprep.subr.bf16.mxu0 %v1088
        %1295 = vmatpush2.bf16.msra.mxu0 %v1087
        %1296 = vmatprep.subr.bf16.mxu0 %v1086
        %1297 = vmatpush2.bf16.msra.mxu0 %v1085
        %1298 = vmatprep.subr.bf16.mxu0 %v1084
        %1299 = vmatpush2.bf16.msra.mxu0 %v1083
        %1300 = vmatprep.subr.bf16.mxu0 %v1082
        %1301 = vmatpush2.bf16.msra.mxu0 %v1081
        %1302 = vmatprep.subr.bf16.mxu0 %v1080
        %1303 = vmatpush2.bf16.msra.mxu0 %v1079
        %1304 = vmatprep.subr.bf16.mxu0 %v1078
        %1305 = vmatpush2.bf16.msra.mxu0 %v1077
        %1306 = vmatprep.subr.bf16.mxu0 %v1076
        %1307 = vmatpush2.bf16.msra.mxu0 %v1075
        %1308 = vmatprep.subr.bf16.mxu0 %v1074
        %1309 = vmatpush2.bf16.msra.mxu0 %v1073
        %1310 = vmatprep.mubr.bf16.mxu0 %v660
        %1311 = vmatmul.mubr.bf16.gmra.mxu0 %v659
        %v1312 = vpop.f32.mrf.mxu0
        %v1313 = vadd.f32 %v476, %v1312
        %v1314 = vpop.f32.mrf.mxu0
        %v1315 = vadd.f32 %v480, %v1314
        %v1316 = vpop.f32.mrf.mxu0
        %v1317 = vadd.f32 %v476, %v1316
        %v1318 = vpop.f32.mrf.mxu0
        %v1319 = vadd.f32 %v480, %v1318
        %1320 = vmatprep.mubr.bf16.mxu0 %v667
        %1321 = vmatmul.mubr.bf16.gmra.mxu0 %v666
        %v1322 = vpop.f32.mrf.mxu0
        %v1323 = vadd.f32 %v476, %v1322
        %v1324 = vpop.f32.mrf.mxu0
        %v1325 = vadd.f32 %v480, %v1324
        %v1326 = vpop.f32.mrf.mxu0
        %v1327 = vadd.f32 %v476, %v1326
        %v1328 = vpop.f32.mrf.mxu0
        %v1329 = vadd.f32 %v480, %v1328
        %1330 = vmatprep.mubr.bf16.mxu0 %v674
        %1331 = vmatmul.mubr.bf16.gmra.mxu0 %v673
        %v1332 = vpop.f32.mrf.mxu0
        %v1333 = vadd.f32 %v476, %v1332
        %v1334 = vpop.f32.mrf.mxu0
        %v1335 = vadd.f32 %v480, %v1334
        %v1336 = vpop.f32.mrf.mxu0
        %v1337 = vadd.f32 %v476, %v1336
        %v1338 = vpop.f32.mrf.mxu0
        %v1339 = vadd.f32 %v480, %v1338
        %1340 = vmatprep.mubr.bf16.mxu0 %v681
        %1341 = vmatmul.mubr.bf16.gmra.mxu0 %v680
        %v1342 = vpop.f32.mrf.mxu0
        %v1343 = vadd.f32 %v476, %v1342
        %v1344 = vpop.f32.mrf.mxu0
        %v1345 = vadd.f32 %v480, %v1344
        %v1346 = vpop.f32.mrf.mxu0
        %v1347 = vadd.f32 %v476, %v1346
        %v1348 = vpop.f32.mrf.mxu0
        %v1349 = vadd.f32 %v480, %v1348
        %1350 = vmatprep.mubr.bf16.mxu0 %v688
        %1351 = vmatmul.mubr.bf16.gmra.mxu0 %v687
        %v1352 = vpop.f32.mrf.mxu0
        %v1353 = vadd.f32 %v476, %v1352
        %v1354 = vpop.f32.mrf.mxu0
        %v1355 = vadd.f32 %v480, %v1354
        %v1356 = vpop.f32.mrf.mxu0
        %v1357 = vadd.f32 %v476, %v1356
        %v1358 = vpop.f32.mrf.mxu0
        %v1359 = vadd.f32 %v480, %v1358
        %1360 = vmatprep.mubr.bf16.mxu0 %v695
        %1361 = vmatmul.mubr.bf16.gmra.mxu0 %v694
        %v1362 = vpop.f32.mrf.mxu0
        %v1363 = vadd.f32 %v476, %v1362
        %v1364 = vpop.f32.mrf.mxu0
        %v1365 = vadd.f32 %v480, %v1364
        %v1366 = vpop.f32.mrf.mxu0
        %v1367 = vadd.f32 %v476, %v1366
        %v1368 = vpop.f32.mrf.mxu0
        %v1369 = vadd.f32 %v480, %v1368
        %1370 = vmatprep.mubr.bf16.mxu0 %v702
        %1371 = vmatmul.mubr.bf16.gmra.mxu0 %v701
        %v1372 = vpop.f32.mrf.mxu0
        %v1373 = vadd.f32 %v476, %v1372
        %v1374 = vpop.f32.mrf.mxu0
        %v1375 = vadd.f32 %v480, %v1374
        %v1376 = vpop.f32.mrf.mxu0
        %v1377 = vadd.f32 %v476, %v1376
        %v1378 = vpop.f32.mrf.mxu0
        %v1379 = vadd.f32 %v480, %v1378
        %1380 = vmatprep.mubr.bf16.mxu0 %v709
        %1381 = vmatmul.mubr.bf16.gmra.mxu0 %v708
        %v1382 = vpop.f32.mrf.mxu0
        %v1383 = vadd.f32 %v476, %v1382
        %v1384 = vpop.f32.mrf.mxu0
        %v1385 = vadd.f32 %v480, %v1384
        %v1386 = vpop.f32.mrf.mxu0
        %v1387 = vadd.f32 %v476, %v1386
        %v1388 = vpop.f32.mrf.mxu0
        %v1389 = vadd.f32 %v480, %v1388
        %1390 = vdwg.mxu0
        %1391 = vmatprep.subr.bf16.mxu0 %v1104
        %1392 = vmatpush1.bf16.msra.mxu0 %v1103
        %1393 = vmatprep.subr.bf16.mxu0 %v1102
        %1394 = vmatpush1.bf16.msra.mxu0 %v1101
        %1395 = vmatprep.subr.bf16.mxu0 %v1100
        %1396 = vmatpush1.bf16.msra.mxu0 %v1099
        %1397 = vmatprep.subr.bf16.mxu0 %v1098
        %1398 = vmatpush1.bf16.msra.mxu0 %v1097
        %1399 = vmatprep.subr.bf16.mxu0 %v1096
        %1400 = vmatpush1.bf16.msra.mxu0 %v1095
        %1401 = vmatprep.subr.bf16.mxu0 %v1094
        %1402 = vmatpush1.bf16.msra.mxu0 %v1093
        %1403 = vmatprep.subr.bf16.mxu0 %v1092
        %1404 = vmatpush1.bf16.msra.mxu0 %v1091
        %1405 = vmatprep.subr.bf16.mxu0 %v1090
        %1406 = vmatpush1.bf16.msra.mxu0 %v1089
        %1407 = vmatprep.subr.bf16.mxu0 %v1120
        %1408 = vmatpush2.bf16.msra.mxu0 %v1119
        %1409 = vmatprep.subr.bf16.mxu0 %v1118
        %1410 = vmatpush2.bf16.msra.mxu0 %v1117
        %1411 = vmatprep.subr.bf16.mxu0 %v1116
        %1412 = vmatpush2.bf16.msra.mxu0 %v1115
        %1413 = vmatprep.subr.bf16.mxu0 %v1114
        %1414 = vmatpush2.bf16.msra.mxu0 %v1113
        %1415 = vmatprep.subr.bf16.mxu0 %v1112
        %1416 = vmatpush2.bf16.msra.mxu0 %v1111
        %1417 = vmatprep.subr.bf16.mxu0 %v1110
        %1418 = vmatpush2.bf16.msra.mxu0 %v1109
        %1419 = vmatprep.subr.bf16.mxu0 %v1108
        %1420 = vmatpush2.bf16.msra.mxu0 %v1107
        %1421 = vmatprep.subr.bf16.mxu0 %v1106
        %1422 = vmatpush2.bf16.msra.mxu0 %v1105
        %1423 = vmatprep.mubr.bf16.mxu0 %v662
        %1424 = vmatmul.mubr.bf16.gmra.mxu0 %v661
        %v1425 = vpop.f32.mrf.mxu0
        %v1426 = vadd.f32 %v1313, %v1425
        %v1427 = vpop.f32.mrf.mxu0
        %v1428 = vadd.f32 %v1315, %v1427
        %v1429 = vpop.f32.mrf.mxu0
        %v1430 = vadd.f32 %v1317, %v1429
        %v1431 = vpop.f32.mrf.mxu0
        %v1432 = vadd.f32 %v1319, %v1431
        %1433 = vmatprep.mubr.bf16.mxu0 %v669
        %1434 = vmatmul.mubr.bf16.gmra.mxu0 %v668
        %v1435 = vpop.f32.mrf.mxu0
        %v1436 = vadd.f32 %v1323, %v1435
        %v1437 = vpop.f32.mrf.mxu0
        %v1438 = vadd.f32 %v1325, %v1437
        %v1439 = vpop.f32.mrf.mxu0
        %v1440 = vadd.f32 %v1327, %v1439
        %v1441 = vpop.f32.mrf.mxu0
        %v1442 = vadd.f32 %v1329, %v1441
        %1443 = vmatprep.mubr.bf16.mxu0 %v676
        %1444 = vmatmul.mubr.bf16.gmra.mxu0 %v675
        %v1445 = vpop.f32.mrf.mxu0
        %v1446 = vadd.f32 %v1333, %v1445
        %v1447 = vpop.f32.mrf.mxu0
        %v1448 = vadd.f32 %v1335, %v1447
        %v1449 = vpop.f32.mrf.mxu0
        %v1450 = vadd.f32 %v1337, %v1449
        %v1451 = vpop.f32.mrf.mxu0
        %v1452 = vadd.f32 %v1339, %v1451
        %1453 = vmatprep.mubr.bf16.mxu0 %v683
        %1454 = vmatmul.mubr.bf16.gmra.mxu0 %v682
        %v1455 = vpop.f32.mrf.mxu0
        %v1456 = vadd.f32 %v1343, %v1455
        %v1457 = vpop.f32.mrf.mxu0
        %v1458 = vadd.f32 %v1345, %v1457
        %v1459 = vpop.f32.mrf.mxu0
        %v1460 = vadd.f32 %v1347, %v1459
        %v1461 = vpop.f32.mrf.mxu0
        %v1462 = vadd.f32 %v1349, %v1461
        %1463 = vmatprep.mubr.bf16.mxu0 %v690
        %1464 = vmatmul.mubr.bf16.gmra.mxu0 %v689
        %v1465 = vpop.f32.mrf.mxu0
        %v1466 = vadd.f32 %v1353, %v1465
        %v1467 = vpop.f32.mrf.mxu0
        %v1468 = vadd.f32 %v1355, %v1467
        %v1469 = vpop.f32.mrf.mxu0
        %v1470 = vadd.f32 %v1357, %v1469
        %v1471 = vpop.f32.mrf.mxu0
        %v1472 = vadd.f32 %v1359, %v1471
        %1473 = vmatprep.mubr.bf16.mxu0 %v697
        %1474 = vmatmul.mubr.bf16.gmra.mxu0 %v696
        %v1475 = vpop.f32.mrf.mxu0
        %v1476 = vadd.f32 %v1363, %v1475
        %v1477 = vpop.f32.mrf.mxu0
        %v1478 = vadd.f32 %v1365, %v1477
        %v1479 = vpop.f32.mrf.mxu0
        %v1480 = vadd.f32 %v1367, %v1479
        %v1481 = vpop.f32.mrf.mxu0
        %v1482 = vadd.f32 %v1369, %v1481
        %1483 = vmatprep.mubr.bf16.mxu0 %v704
        %1484 = vmatmul.mubr.bf16.gmra.mxu0 %v703
        %v1485 = vpop.f32.mrf.mxu0
        %v1486 = vadd.f32 %v1373, %v1485
        %v1487 = vpop.f32.mrf.mxu0
        %v1488 = vadd.f32 %v1375, %v1487
        %v1489 = vpop.f32.mrf.mxu0
        %v1490 = vadd.f32 %v1377, %v1489
        %v1491 = vpop.f32.mrf.mxu0
        %v1492 = vadd.f32 %v1379, %v1491
        %1493 = vmatprep.mubr.bf16.mxu0 %v711
        %1494 = vmatmul.mubr.bf16.gmra.mxu0 %v710
        %v1495 = vpop.f32.mrf.mxu0
        %v1496 = vadd.f32 %v1383, %v1495
        %v1497 = vpop.f32.mrf.mxu0
        %v1498 = vadd.f32 %v1385, %v1497
        %v1499 = vpop.f32.mrf.mxu0
        %v1500 = vadd.f32 %v1387, %v1499
        %v1501 = vpop.f32.mrf.mxu0
        %v1502 = vadd.f32 %v1389, %v1501
        %1503 = vdwg.mxu0
        %1504 = vmatprep.subr.bf16.mxu0 %v1136
        %1505 = vmatpush1.bf16.msra.mxu0 %v1135
        %1506 = vmatprep.subr.bf16.mxu0 %v1134
        %1507 = vmatpush1.bf16.msra.mxu0 %v1133
        %1508 = vmatprep.subr.bf16.mxu0 %v1132
        %1509 = vmatpush1.bf16.msra.mxu0 %v1131
        %1510 = vmatprep.subr.bf16.mxu0 %v1130
        %1511 = vmatpush1.bf16.msra.mxu0 %v1129
        %1512 = vmatprep.subr.bf16.mxu0 %v1128
        %1513 = vmatpush1.bf16.msra.mxu0 %v1127
        %1514 = vmatprep.subr.bf16.mxu0 %v1126
        %1515 = vmatpush1.bf16.msra.mxu0 %v1125
        %1516 = vmatprep.subr.bf16.mxu0 %v1124
        %1517 = vmatpush1.bf16.msra.mxu0 %v1123
        %1518 = vmatprep.subr.bf16.mxu0 %v1122
        %1519 = vmatpush1.bf16.msra.mxu0 %v1121
        %1520 = vmatprep.subr.bf16.mxu0 %v1152
        %1521 = vmatpush2.bf16.msra.mxu0 %v1151
        %1522 = vmatprep.subr.bf16.mxu0 %v1150
        %1523 = vmatpush2.bf16.msra.mxu0 %v1149
        %1524 = vmatprep.subr.bf16.mxu0 %v1148
        %1525 = vmatpush2.bf16.msra.mxu0 %v1147
        %1526 = vmatprep.subr.bf16.mxu0 %v1146
        %1527 = vmatpush2.bf16.msra.mxu0 %v1145
        %1528 = vmatprep.subr.bf16.mxu0 %v1144
        %1529 = vmatpush2.bf16.msra.mxu0 %v1143
        %1530 = vmatprep.subr.bf16.mxu0 %v1142
        %1531 = vmatpush2.bf16.msra.mxu0 %v1141
        %1532 = vmatprep.subr.bf16.mxu0 %v1140
        %1533 = vmatpush2.bf16.msra.mxu0 %v1139
        %1534 = vmatprep.subr.bf16.mxu0 %v1138
        %1535 = vmatpush2.bf16.msra.mxu0 %v1137
        %1536 = vmatprep.mubr.bf16.mxu0 %v664
        %1537 = vmatmul.mubr.bf16.gmra.mxu0 %v663
        %v1538 = vpop.f32.mrf.mxu0
        %v1539 = vadd.f32 %v1426, %v1538
        %v1540 = vpop.f32.mrf.mxu0
        %v1541 = vadd.f32 %v1428, %v1540
        %v1542 = vpop.f32.mrf.mxu0
        %v1543 = vadd.f32 %v1430, %v1542
        %v1544 = vpop.f32.mrf.mxu0
        %v1545 = vadd.f32 %v1432, %v1544
        %1546 = vmatprep.mubr.bf16.mxu0 %v671
        %1547 = vmatmul.mubr.bf16.gmra.mxu0 %v670
        %v1548 = vpop.f32.mrf.mxu0
        %v1549 = vadd.f32 %v1436, %v1548
        %v1550 = vpop.f32.mrf.mxu0
        %v1551 = vadd.f32 %v1438, %v1550
        %v1552 = vpop.f32.mrf.mxu0
        %v1553 = vadd.f32 %v1440, %v1552
        %v1554 = vpop.f32.mrf.mxu0
        %v1555 = vadd.f32 %v1442, %v1554
        %1556 = vmatprep.mubr.bf16.mxu0 %v678
        %1557 = vmatmul.mubr.bf16.gmra.mxu0 %v677
        %v1558 = vpop.f32.mrf.mxu0
        %v1559 = vadd.f32 %v1446, %v1558
        %v1560 = vpop.f32.mrf.mxu0
        %v1561 = vadd.f32 %v1448, %v1560
        %v1562 = vpop.f32.mrf.mxu0
        %v1563 = vadd.f32 %v1450, %v1562
        %v1564 = vpop.f32.mrf.mxu0
        %v1565 = vadd.f32 %v1452, %v1564
        %1566 = vmatprep.mubr.bf16.mxu0 %v685
        %1567 = vmatmul.mubr.bf16.gmra.mxu0 %v684
        %v1568 = vpop.f32.mrf.mxu0
        %v1569 = vadd.f32 %v1456, %v1568
        %v1570 = vpop.f32.mrf.mxu0
        %v1571 = vadd.f32 %v1458, %v1570
        %v1572 = vpop.f32.mrf.mxu0
        %v1573 = vadd.f32 %v1460, %v1572
        %v1574 = vpop.f32.mrf.mxu0
        %v1575 = vadd.f32 %v1462, %v1574
        %1576 = vmatprep.mubr.bf16.mxu0 %v692
        %1577 = vmatmul.mubr.bf16.gmra.mxu0 %v691
        %v1578 = vpop.f32.mrf.mxu0
        %v1579 = vadd.f32 %v1466, %v1578
        %v1580 = vpop.f32.mrf.mxu0
        %v1581 = vadd.f32 %v1468, %v1580
        %v1582 = vpop.f32.mrf.mxu0
        %v1583 = vadd.f32 %v1470, %v1582
        %v1584 = vpop.f32.mrf.mxu0
        %v1585 = vadd.f32 %v1472, %v1584
        %1586 = vmatprep.mubr.bf16.mxu0 %v699
        %1587 = vmatmul.mubr.bf16.gmra.mxu0 %v698
        %v1588 = vpop.f32.mrf.mxu0
        %v1589 = vadd.f32 %v1476, %v1588
        %v1590 = vpop.f32.mrf.mxu0
        %v1591 = vadd.f32 %v1478, %v1590
        %v1592 = vpop.f32.mrf.mxu0
        %v1593 = vadd.f32 %v1480, %v1592
        %v1594 = vpop.f32.mrf.mxu0
        %v1595 = vadd.f32 %v1482, %v1594
        %1596 = vmatprep.mubr.bf16.mxu0 %v706
        %1597 = vmatmul.mubr.bf16.gmra.mxu0 %v705
        %v1598 = vpop.f32.mrf.mxu0
        %v1599 = vadd.f32 %v1486, %v1598
        %v1600 = vpop.f32.mrf.mxu0
        %v1601 = vadd.f32 %v1488, %v1600
        %v1602 = vpop.f32.mrf.mxu0
        %v1603 = vadd.f32 %v1490, %v1602
        %v1604 = vpop.f32.mrf.mxu0
        %v1605 = vadd.f32 %v1492, %v1604
        %1606 = vmatprep.mubr.bf16.mxu0 %v713
        %1607 = vmatmul.mubr.bf16.gmra.mxu0 %v712
        %v1608 = vpop.f32.mrf.mxu0
        %v1609 = vadd.f32 %v1496, %v1608
        %v1610 = vpop.f32.mrf.mxu0
        %v1611 = vadd.f32 %v1498, %v1610
        %v1612 = vpop.f32.mrf.mxu0
        %v1613 = vadd.f32 %v1500, %v1612
        %v1614 = vpop.f32.mrf.mxu0
        %v1615 = vadd.f32 %v1502, %v1614
        %1616 = vdwg.mxu0
        %1617 = vmatprep.subr.bf16.mxu0 0
        %1618 = vmatpush1.bf16.msra.mxu0 0
        %1619 = vmatprep.subr.bf16.mxu0 0
        %1620 = vmatpush1.bf16.msra.mxu0 0
        %1621 = vmatprep.subr.bf16.mxu0 0
        %1622 = vmatpush1.bf16.msra.mxu0 0
        %1623 = vmatprep.subr.bf16.mxu0 0
        %1624 = vmatpush1.bf16.msra.mxu0 0
        %1625 = vmatprep.subr.bf16.mxu0 0
        %1626 = vmatpush1.bf16.msra.mxu0 0
        %1627 = vmatprep.subr.bf16.mxu0 0
        %1628 = vmatpush1.bf16.msra.mxu0 0
        %1629 = vmatprep.subr.bf16.mxu0 0
        %1630 = vmatpush1.bf16.msra.mxu0 0
        %1631 = vmatprep.subr.bf16.mxu0 %v1154
        %1632 = vmatpush1.bf16.msra.mxu0 %v1153
        %1633 = vmatprep.subr.bf16.mxu0 0
        %1634 = vmatpush2.bf16.msra.mxu0 0
        %1635 = vmatprep.subr.bf16.mxu0 0
        %1636 = vmatpush2.bf16.msra.mxu0 0
        %1637 = vmatprep.subr.bf16.mxu0 0
        %1638 = vmatpush2.bf16.msra.mxu0 0
        %1639 = vmatprep.subr.bf16.mxu0 0
        %1640 = vmatpush2.bf16.msra.mxu0 0
        %1641 = vmatprep.subr.bf16.mxu0 0
        %1642 = vmatpush2.bf16.msra.mxu0 0
        %1643 = vmatprep.subr.bf16.mxu0 0
        %1644 = vmatpush2.bf16.msra.mxu0 0
        %1645 = vmatprep.subr.bf16.mxu0 0
        %1646 = vmatpush2.bf16.msra.mxu0 0
        %1647 = vmatprep.subr.bf16.mxu0 0
        %1648 = vmatpush2.bf16.msra.mxu0 0
        %1649 = vmatprep.mubr.bf16.mxu0 0
        %1650 = vmatmul.mubr.bf16.gmra.mxu0 %v1255
        %v1651 = vpop.f32.mrf.mxu0
        %v1652 = vadd.f32 %v1539, %v1651
        %v1653 = vpop.f32.mrf.mxu0
        %v1654 = vadd.f32 %v1541, %v1653
        %v1655 = vpop.f32.mrf.mxu0
        %v1656 = vadd.f32 %v1543, %v1655
        %v1657 = vpop.f32.mrf.mxu0
        %v1658 = vadd.f32 %v1545, %v1657
        %1659 = vmatprep.mubr.bf16.mxu0 0
        %1660 = vmatmul.mubr.bf16.gmra.mxu0 %v1258
        %v1661 = vpop.f32.mrf.mxu0
        %v1662 = vadd.f32 %v1549, %v1661
        %v1663 = vpop.f32.mrf.mxu0
        %v1664 = vadd.f32 %v1551, %v1663
        %v1665 = vpop.f32.mrf.mxu0
        %v1666 = vadd.f32 %v1553, %v1665
        %v1667 = vpop.f32.mrf.mxu0
        %v1668 = vadd.f32 %v1555, %v1667
        %1669 = vmatprep.mubr.bf16.mxu0 0
        %1670 = vmatmul.mubr.bf16.gmra.mxu0 %v1261
        %v1671 = vpop.f32.mrf.mxu0
        %v1672 = vadd.f32 %v1559, %v1671
        %v1673 = vpop.f32.mrf.mxu0
        %v1674 = vadd.f32 %v1561, %v1673
        %v1675 = vpop.f32.mrf.mxu0
        %v1676 = vadd.f32 %v1563, %v1675
        %v1677 = vpop.f32.mrf.mxu0
        %v1678 = vadd.f32 %v1565, %v1677
        %1679 = vmatprep.mubr.bf16.mxu0 0
        %1680 = vmatmul.mubr.bf16.gmra.mxu0 %v1264
        %v1681 = vpop.f32.mrf.mxu0
        %v1682 = vadd.f32 %v1569, %v1681
        %v1683 = vpop.f32.mrf.mxu0
        %v1684 = vadd.f32 %v1571, %v1683
        %v1685 = vpop.f32.mrf.mxu0
        %v1686 = vadd.f32 %v1573, %v1685
        %v1687 = vpop.f32.mrf.mxu0
        %v1688 = vadd.f32 %v1575, %v1687
        %1689 = vmatprep.mubr.bf16.mxu0 0
        %1690 = vmatmul.mubr.bf16.gmra.mxu0 %v1267
        %v1691 = vpop.f32.mrf.mxu0
        %v1692 = vadd.f32 %v1579, %v1691
        %v1693 = vpop.f32.mrf.mxu0
        %v1694 = vadd.f32 %v1581, %v1693
        %v1695 = vpop.f32.mrf.mxu0
        %v1696 = vadd.f32 %v1583, %v1695
        %v1697 = vpop.f32.mrf.mxu0
        %v1698 = vadd.f32 %v1585, %v1697
        %1699 = vmatprep.mubr.bf16.mxu0 0
        %1700 = vmatmul.mubr.bf16.gmra.mxu0 %v1270
        %v1701 = vpop.f32.mrf.mxu0
        %v1702 = vadd.f32 %v1589, %v1701
        %v1703 = vpop.f32.mrf.mxu0
        %v1704 = vadd.f32 %v1591, %v1703
        %v1705 = vpop.f32.mrf.mxu0
        %v1706 = vadd.f32 %v1593, %v1705
        %v1707 = vpop.f32.mrf.mxu0
        %v1708 = vadd.f32 %v1595, %v1707
        %1709 = vmatprep.mubr.bf16.mxu0 0
        %1710 = vmatmul.mubr.bf16.gmra.mxu0 %v1273
        %v1711 = vpop.f32.mrf.mxu0
        %v1712 = vadd.f32 %v1599, %v1711
        %v1713 = vpop.f32.mrf.mxu0
        %v1714 = vadd.f32 %v1601, %v1713
        %v1715 = vpop.f32.mrf.mxu0
        %v1716 = vadd.f32 %v1603, %v1715
        %v1717 = vpop.f32.mrf.mxu0
        %v1718 = vadd.f32 %v1605, %v1717
        %1719 = vmatprep.mubr.bf16.mxu0 0
        %1720 = vmatmul.mubr.bf16.gmra.mxu0 %v1276
        %v1721 = vpop.f32.mrf.mxu0
        %v1722 = vadd.f32 %v1609, %v1721
        %v1723 = vpop.f32.mrf.mxu0
        %v1724 = vadd.f32 %v1611, %v1723
        %v1725 = vpop.f32.mrf.mxu0
        %v1726 = vadd.f32 %v1613, %v1725
        %v1727 = vpop.f32.mrf.mxu0
        %v1728 = vadd.f32 %v1615, %v1727
        %1729 = vdwg.mxu0
        %v1730 = vmax.f32 %v1652, 0.0
        %v1731 = vmax.f32 %v1654, 0.0
        %v1732 = vmax.f32 %v1656, 0.0
        %v1733 = vmax.f32 %v1658, 0.0
        %v1734 = vmax.f32 %v1662, 0.0
        %v1735 = vmax.f32 %v1664, 0.0
        %v1736 = vmax.f32 %v1666, 0.0
        %v1737 = vmax.f32 %v1668, 0.0
        %v1738 = vmax.f32 %v1672, 0.0
        %v1739 = vmax.f32 %v1674, 0.0
        %v1740 = vmax.f32 %v1676, 0.0
        %v1741 = vmax.f32 %v1678, 0.0
        %v1742 = vmax.f32 %v1682, 0.0
        %v1743 = vmax.f32 %v1684, 0.0
        %v1744 = vmax.f32 %v1686, 0.0
        %v1745 = vmax.f32 %v1688, 0.0
        %v1746 = vmax.f32 %v1692, 0.0
        %v1747 = vmax.f32 %v1694, 0.0
        %v1748 = vmax.f32 %v1696, 0.0
        %v1749 = vmax.f32 %v1698, 0.0
        %v1750 = vmax.f32 %v1702, 0.0
        %v1751 = vmax.f32 %v1704, 0.0
        %v1752 = vmax.f32 %v1706, 0.0
        %v1753 = vmax.f32 %v1708, 0.0
        %v1754 = vmax.f32 %v1712, 0.0
        %v1755 = vmax.f32 %v1714, 0.0
        %v1756 = vmax.f32 %v1716, 0.0
        %v1757 = vmax.f32 %v1718, 0.0
        %v1758 = vmax.f32 %v1722, 0.0
        %v1759 = vmax.f32 %v1724, 0.0
        %v1760 = vmax.f32 %v1726, 0.0
        %v1761 = vmax.f32 %v1728, 0.0
        %v1762 = vpack.c.bf16 %v1732, %v1730
        %v1763 = vpack.c.bf16 %v1733, %v1731
        %v1764 = vpack.c.bf16 %v1736, %v1734
        %v1765 = vpack.c.bf16 %v1737, %v1735
        %v1766 = vpack.c.bf16 %v1740, %v1738
        %v1767 = vpack.c.bf16 %v1741, %v1739
        %v1768 = vpack.c.bf16 %v1744, %v1742
        %v1769 = vpack.c.bf16 %v1745, %v1743
        %v1770 = vpack.c.bf16 %v1748, %v1746
        %v1771 = vpack.c.bf16 %v1749, %v1747
        %v1772 = vpack.c.bf16 %v1752, %v1750
        %v1773 = vpack.c.bf16 %v1753, %v1751
        %v1774 = vpack.c.bf16 %v1756, %v1754
        %v1775 = vpack.c.bf16 %v1757, %v1755
        %v1776 = vpack.c.bf16 %v1760, %v1758
        %v1777 = vpack.c.bf16 %v1761, %v1759
        %v1778 = vld [vmem:[%s3] sm:$0xff]
        %v1779 = vld [vmem:[%s3 + $0x8] sm:$0xff]
        %v1780 = vld [vmem:[%s3 + $0x10] sm:$0xff]
        %v1781 = vld [vmem:[%s3 + $0x18] sm:$0xff]
        %v1782 = vld [vmem:[%s3 + $0x20] sm:$0xff]
        %v1783 = vld [vmem:[%s3 + $0x28] sm:$0xff]
        %v1784 = vld [vmem:[%s3 + $0x30] sm:$0xff]
        %v1785 = vld [vmem:[%s3 + $0x38] sm:$0xff]
        %v1786 = vld [vmem:[%s3 + $0x40] sm:$0xff]
        %v1787 = vld [vmem:[%s3 + $0x48] sm:$0xff]
        %v1788 = vld [vmem:[%s3 + $0x50] sm:$0xff]
        %v1789 = vld [vmem:[%s3 + $0x58] sm:$0xff]
        %v1790 = vld [vmem:[%s3 + $0x60] sm:$0xff]
        %v1791 = vld [vmem:[%s3 + $0x68] sm:$0xff]
        %v1792 = vld [vmem:[%s3 + $0x70] sm:$0xff]
        %v1793 = vld [vmem:[%s3 + $0x78] sm:$0xff]
        %v1794 = vld [vmem:[%s3 + $0x80] sm:$0xff]
        %v1795 = vld [vmem:[%s3 + $0x88] sm:$0xff]
        %v1796 = vld [vmem:[%s3 + $0x90] sm:$0xff]
        %v1797 = vld [vmem:[%s3 + $0x98] sm:$0xff]
        %v1798 = vld [vmem:[%s3 + $0xa0] sm:$0xff]
        %v1799 = vld [vmem:[%s3 + $0xa8] sm:$0xff]
        %v1800 = vld [vmem:[%s3 + $0xb0] sm:$0xff]
        %v1801 = vld [vmem:[%s3 + $0xb8] sm:$0xff]
        %v1802 = vld [vmem:[%s3 + $0xc0] sm:$0xff]
        %v1803 = vld [vmem:[%s3 + $0xc8] sm:$0xff]
        %v1804 = vld [vmem:[%s3 + $0xd0] sm:$0xff]
        %v1805 = vld [vmem:[%s3 + $0xd8] sm:$0xff]
        %v1806 = vld [vmem:[%s3 + $0xe0] sm:$0xff]
        %v1807 = vld [vmem:[%s3 + $0xe8] sm:$0xff]
        %v1808 = vld [vmem:[%s3 + $0xf0] sm:$0xff]
        %v1809 = vld [vmem:[%s3 + $0xf8] sm:$0xff]
        %v1810 = vld [vmem:[%s4] sm:$0x3]
        %v1812 = vlaneseq
        %v1813 = vshrl.u32 %v1812, 7
        %v1814 = vsub.s32 0, %v1813
        %v1815 = vrot.slane %v1810, %v1814
        %v1816 = vlaneseq
        %v1817 = vshrl.u32 %v1816, 7
        %v1818 = vsub.s32 1, %v1817
        %v1819 = vrot.slane %v1810, %v1818
        %v1854 = vunpack.c.l.b16 %v1778
        %v1855 = vunpack.c.h.b16 %v1778
        %v1856 = vunpack.c.l.b16 %v1779
        %v1857 = vunpack.c.h.b16 %v1779
        %v1858 = vunpack.c.l.b16 %v1780
        %v1859 = vunpack.c.h.b16 %v1780
        %v1860 = vunpack.c.l.b16 %v1781
        %v1861 = vunpack.c.h.b16 %v1781
        %v1862 = vunpack.c.l.b16 %v1782
        %v1863 = vunpack.c.h.b16 %v1782
        %v1864 = vunpack.c.l.b16 %v1783
        %v1865 = vunpack.c.h.b16 %v1783
        %v1866 = vunpack.c.l.b16 %v1784
        %v1867 = vunpack.c.h.b16 %v1784
        %v1868 = vunpack.c.l.b16 %v1785
        %v1869 = vunpack.c.h.b16 %v1785
        %v1870 = vunpack.c.l.b16 %v1786
        %v1871 = vunpack.c.h.b16 %v1786
        %v1872 = vunpack.c.l.b16 %v1787
        %v1873 = vunpack.c.h.b16 %v1787
        %v1874 = vunpack.c.l.b16 %v1788
        %v1875 = vunpack.c.h.b16 %v1788
        %v1876 = vunpack.c.l.b16 %v1789
        %v1877 = vunpack.c.h.b16 %v1789
        %v1878 = vunpack.c.l.b16 %v1790
        %v1879 = vunpack.c.h.b16 %v1790
        %v1880 = vunpack.c.l.b16 %v1791
        %v1881 = vunpack.c.h.b16 %v1791
        %v1882 = vunpack.c.l.b16 %v1792
        %v1883 = vunpack.c.h.b16 %v1792
        %v1884 = vunpack.c.l.b16 %v1793
        %v1885 = vunpack.c.h.b16 %v1793
        %v1886 = vunpack.c.l.b16 %v1794
        %v1887 = vunpack.c.h.b16 %v1794
        %v1888 = vunpack.c.l.b16 %v1795
        %v1889 = vunpack.c.h.b16 %v1795
        %v1890 = vunpack.c.l.b16 %v1796
        %v1891 = vunpack.c.h.b16 %v1796
        %v1892 = vunpack.c.l.b16 %v1797
        %v1893 = vunpack.c.h.b16 %v1797
        %v1894 = vunpack.c.l.b16 %v1798
        %v1895 = vunpack.c.h.b16 %v1798
        %v1896 = vunpack.c.l.b16 %v1799
        %v1897 = vunpack.c.h.b16 %v1799
        %v1898 = vunpack.c.l.b16 %v1800
        %v1899 = vunpack.c.h.b16 %v1800
        %v1900 = vunpack.c.l.b16 %v1801
        %v1901 = vunpack.c.h.b16 %v1801
        %v1902 = vunpack.c.l.b16 %v1802
        %v1903 = vunpack.c.h.b16 %v1802
        %v1904 = vunpack.c.l.b16 %v1803
        %v1905 = vunpack.c.h.b16 %v1803
        %v1906 = vunpack.c.l.b16 %v1804
        %v1907 = vunpack.c.h.b16 %v1804
        %v1908 = vunpack.c.l.b16 %v1805
        %v1909 = vunpack.c.h.b16 %v1805
        %v1910 = vunpack.c.l.b16 %v1806
        %v1911 = vunpack.c.h.b16 %v1806
        %v1912 = vunpack.c.l.b16 %v1807
        %v1913 = vunpack.c.h.b16 %v1807
        %v1914 = vunpack.c.l.b16 %v1808
        %v1915 = vunpack.c.h.b16 %v1808
        %v1916 = vunpack.c.l.b16 %v1809
        %v1917 = vunpack.c.h.b16 %v1809
        %v1918 = vpack.c.b16 %v1856, %v1854
        %v1919 = vpack.c.b16 %v1857, %v1855
        %v1920 = vpack.c.b16 %v1860, %v1858
        %v1921 = vpack.c.b16 %v1861, %v1859
        %v1922 = vpack.c.b16 %v1864, %v1862
        %v1923 = vpack.c.b16 %v1865, %v1863
        %v1924 = vpack.c.b16 %v1868, %v1866
        %v1925 = vpack.c.b16 %v1869, %v1867
        %v1926 = vpack.c.b16 %v1872, %v1870
        %v1927 = vpack.c.b16 %v1873, %v1871
        %v1928 = vpack.c.b16 %v1876, %v1874
        %v1929 = vpack.c.b16 %v1877, %v1875
        %v1930 = vpack.c.b16 %v1880, %v1878
        %v1931 = vpack.c.b16 %v1881, %v1879
        %v1932 = vpack.c.b16 %v1884, %v1882
        %v1933 = vpack.c.b16 %v1885, %v1883
        %v1934 = vpack.c.b16 %v1888, %v1886
        %v1935 = vpack.c.b16 %v1889, %v1887
        %v1936 = vpack.c.b16 %v1892, %v1890
        %v1937 = vpack.c.b16 %v1893, %v1891
        %v1938 = vpack.c.b16 %v1896, %v1894
        %v1939 = vpack.c.b16 %v1897, %v1895
        %v1940 = vpack.c.b16 %v1900, %v1898
        %v1941 = vpack.c.b16 %v1901, %v1899
        %v1942 = vpack.c.b16 %v1904, %v1902
        %v1943 = vpack.c.b16 %v1905, %v1903
        %v1944 = vpack.c.b16 %v1908, %v1906
        %v1945 = vpack.c.b16 %v1909, %v1907
        %v1946 = vpack.c.b16 %v1912, %v1910
        %v1947 = vpack.c.b16 %v1913, %v1911
        %v1948 = vpack.c.b16 %v1916, %v1914
        %v1949 = vpack.c.b16 %v1917, %v1915
        %1982 = vmatprep.subr.bf16.mxu0 %v1933
        %1983 = vmatpush1.bf16.msra.mxu0 %v1932
        %1984 = vmatprep.subr.bf16.mxu0 %v1931
        %1985 = vmatpush1.bf16.msra.mxu0 %v1930
        %1986 = vmatprep.subr.bf16.mxu0 %v1929
        %1987 = vmatpush1.bf16.msra.mxu0 %v1928
        %1988 = vmatprep.subr.bf16.mxu0 %v1927
        %1989 = vmatpush1.bf16.msra.mxu0 %v1926
        %1990 = vmatprep.subr.bf16.mxu0 %v1925
        %1991 = vmatpush1.bf16.msra.mxu0 %v1924
        %1992 = vmatprep.subr.bf16.mxu0 %v1923
        %1993 = vmatpush1.bf16.msra.mxu0 %v1922
        %1994 = vmatprep.subr.bf16.mxu0 %v1921
        %1995 = vmatpush1.bf16.msra.mxu0 %v1920
        %1996 = vmatprep.subr.bf16.mxu0 %v1919
        %1997 = vmatpush1.bf16.msra.mxu0 %v1918
        %1998 = vmatprep.subr.bf16.mxu0 %v1949
        %1999 = vmatpush2.bf16.msra.mxu0 %v1948
        %2000 = vmatprep.subr.bf16.mxu0 %v1947
        %2001 = vmatpush2.bf16.msra.mxu0 %v1946
        %2002 = vmatprep.subr.bf16.mxu0 %v1945
        %2003 = vmatpush2.bf16.msra.mxu0 %v1944
        %2004 = vmatprep.subr.bf16.mxu0 %v1943
        %2005 = vmatpush2.bf16.msra.mxu0 %v1942
        %2006 = vmatprep.subr.bf16.mxu0 %v1941
        %2007 = vmatpush2.bf16.msra.mxu0 %v1940
        %2008 = vmatprep.subr.bf16.mxu0 %v1939
        %2009 = vmatpush2.bf16.msra.mxu0 %v1938
        %2010 = vmatprep.subr.bf16.mxu0 %v1937
        %2011 = vmatpush2.bf16.msra.mxu0 %v1936
        %2012 = vmatprep.subr.bf16.mxu0 %v1935
        %2013 = vmatpush2.bf16.msra.mxu0 %v1934
        %2014 = vmatprep.mubr.bf16.mxu0 %v1763
        %2015 = vmatmul.mubr.bf16.gmra.mxu0 %v1762
        %v2016 = vpop.f32.mrf.mxu0
        %v2017 = vadd.f32 %v1815, %v2016
        %v2018 = vpop.f32.mrf.mxu0
        %v2019 = vadd.f32 %v1819, %v2018
        %v2020 = vpop.f32.mrf.mxu0
        %v2021 = vadd.f32 %v1815, %v2020
        %v2022 = vpop.f32.mrf.mxu0
        %v2023 = vadd.f32 %v1819, %v2022
        %2024 = vmatprep.mubr.bf16.mxu0 %v1765
        %2025 = vmatmul.mubr.bf16.gmra.mxu0 %v1764
        %v2026 = vpop.f32.mrf.mxu0
        %v2027 = vadd.f32 %v1815, %v2026
        %v2028 = vpop.f32.mrf.mxu0
        %v2029 = vadd.f32 %v1819, %v2028
        %v2030 = vpop.f32.mrf.mxu0
        %v2031 = vadd.f32 %v1815, %v2030
        %v2032 = vpop.f32.mrf.mxu0
        %v2033 = vadd.f32 %v1819, %v2032
        %2034 = vmatprep.mubr.bf16.mxu0 %v1767
        %2035 = vmatmul.mubr.bf16.gmra.mxu0 %v1766
        %v2036 = vpop.f32.mrf.mxu0
        %v2037 = vadd.f32 %v1815, %v2036
        %v2038 = vpop.f32.mrf.mxu0
        %v2039 = vadd.f32 %v1819, %v2038
        %v2040 = vpop.f32.mrf.mxu0
        %v2041 = vadd.f32 %v1815, %v2040
        %v2042 = vpop.f32.mrf.mxu0
        %v2043 = vadd.f32 %v1819, %v2042
        %2044 = vmatprep.mubr.bf16.mxu0 %v1769
        %2045 = vmatmul.mubr.bf16.gmra.mxu0 %v1768
        %v2046 = vpop.f32.mrf.mxu0
        %v2047 = vadd.f32 %v1815, %v2046
        %v2048 = vpop.f32.mrf.mxu0
        %v2049 = vadd.f32 %v1819, %v2048
        %v2050 = vpop.f32.mrf.mxu0
        %v2051 = vadd.f32 %v1815, %v2050
        %v2052 = vpop.f32.mrf.mxu0
        %v2053 = vadd.f32 %v1819, %v2052
        %2054 = vmatprep.mubr.bf16.mxu0 %v1771
        %2055 = vmatmul.mubr.bf16.gmra.mxu0 %v1770
        %v2056 = vpop.f32.mrf.mxu0
        %v2057 = vadd.f32 %v1815, %v2056
        %v2058 = vpop.f32.mrf.mxu0
        %v2059 = vadd.f32 %v1819, %v2058
        %v2060 = vpop.f32.mrf.mxu0
        %v2061 = vadd.f32 %v1815, %v2060
        %v2062 = vpop.f32.mrf.mxu0
        %v2063 = vadd.f32 %v1819, %v2062
        %2064 = vmatprep.mubr.bf16.mxu0 %v1773
        %2065 = vmatmul.mubr.bf16.gmra.mxu0 %v1772
        %v2066 = vpop.f32.mrf.mxu0
        %v2067 = vadd.f32 %v1815, %v2066
        %v2068 = vpop.f32.mrf.mxu0
        %v2069 = vadd.f32 %v1819, %v2068
        %v2070 = vpop.f32.mrf.mxu0
        %v2071 = vadd.f32 %v1815, %v2070
        %v2072 = vpop.f32.mrf.mxu0
        %v2073 = vadd.f32 %v1819, %v2072
        %2074 = vmatprep.mubr.bf16.mxu0 %v1775
        %2075 = vmatmul.mubr.bf16.gmra.mxu0 %v1774
        %v2076 = vpop.f32.mrf.mxu0
        %v2077 = vadd.f32 %v1815, %v2076
        %v2078 = vpop.f32.mrf.mxu0
        %v2079 = vadd.f32 %v1819, %v2078
        %v2080 = vpop.f32.mrf.mxu0
        %v2081 = vadd.f32 %v1815, %v2080
        %v2082 = vpop.f32.mrf.mxu0
        %v2083 = vadd.f32 %v1819, %v2082
        %2084 = vmatprep.mubr.bf16.mxu0 %v1777
        %2085 = vmatmul.mubr.bf16.gmra.mxu0 %v1776
        %v2086 = vpop.f32.mrf.mxu0
        %v2087 = vadd.f32 %v1815, %v2086
        %v2088 = vpop.f32.mrf.mxu0
        %v2089 = vadd.f32 %v1819, %v2088
        %v2090 = vpop.f32.mrf.mxu0
        %v2091 = vadd.f32 %v1815, %v2090
        %v2092 = vpop.f32.mrf.mxu0
        %v2093 = vadd.f32 %v1819, %v2092
        %2094 = vdwg.mxu0
        %v2095 = vmax.f32 %v2017, 0.0
        %v2096 = vmax.f32 %v2019, 0.0
        %v2097 = vmax.f32 %v2021, 0.0
        %v2098 = vmax.f32 %v2023, 0.0
        %v2099 = vmax.f32 %v2027, 0.0
        %v2100 = vmax.f32 %v2029, 0.0
        %v2101 = vmax.f32 %v2031, 0.0
        %v2102 = vmax.f32 %v2033, 0.0
        %v2103 = vmax.f32 %v2037, 0.0
        %v2104 = vmax.f32 %v2039, 0.0
        %v2105 = vmax.f32 %v2041, 0.0
        %v2106 = vmax.f32 %v2043, 0.0
        %v2107 = vmax.f32 %v2047, 0.0
        %v2108 = vmax.f32 %v2049, 0.0
        %v2109 = vmax.f32 %v2051, 0.0
        %v2110 = vmax.f32 %v2053, 0.0
        %v2111 = vmax.f32 %v2057, 0.0
        %v2112 = vmax.f32 %v2059, 0.0
        %v2113 = vmax.f32 %v2061, 0.0
        %v2114 = vmax.f32 %v2063, 0.0
        %v2115 = vmax.f32 %v2067, 0.0
        %v2116 = vmax.f32 %v2069, 0.0
        %v2117 = vmax.f32 %v2071, 0.0
        %v2118 = vmax.f32 %v2073, 0.0
        %v2119 = vmax.f32 %v2077, 0.0
        %v2120 = vmax.f32 %v2079, 0.0
        %v2121 = vmax.f32 %v2081, 0.0
        %v2122 = vmax.f32 %v2083, 0.0
        %v2123 = vmax.f32 %v2087, 0.0
        %v2124 = vmax.f32 %v2089, 0.0
        %v2125 = vmax.f32 %v2091, 0.0
        %v2126 = vmax.f32 %v2093, 0.0
        %v2127 = vpack.c.bf16 %v2097, %v2095
        %v2128 = vpack.c.bf16 %v2098, %v2096
        %v2129 = vpack.c.bf16 %v2101, %v2099
        %v2130 = vpack.c.bf16 %v2102, %v2100
        %v2131 = vpack.c.bf16 %v2105, %v2103
        %v2132 = vpack.c.bf16 %v2106, %v2104
        %v2133 = vpack.c.bf16 %v2109, %v2107
        %v2134 = vpack.c.bf16 %v2110, %v2108
        %v2135 = vpack.c.bf16 %v2113, %v2111
        %v2136 = vpack.c.bf16 %v2114, %v2112
        %v2137 = vpack.c.bf16 %v2117, %v2115
        %v2138 = vpack.c.bf16 %v2118, %v2116
        %v2139 = vpack.c.bf16 %v2121, %v2119
        %v2140 = vpack.c.bf16 %v2122, %v2120
        %v2141 = vpack.c.bf16 %v2125, %v2123
        %v2142 = vpack.c.bf16 %v2126, %v2124
        %v2143 = vld [vmem:[%s5] sm:$0xf]
        %v2144 = vld [vmem:[%s5 + $0x4] sm:$0xf]
        %v2145 = vld [vmem:[%s5 + $0x8] sm:$0xf]
        %v2146 = vld [vmem:[%s5 + $0xc] sm:$0xf]
        %v2147 = vld [vmem:[%s5 + $0x10] sm:$0xf]
        %v2148 = vld [vmem:[%s5 + $0x14] sm:$0xf]
        %v2149 = vld [vmem:[%s5 + $0x18] sm:$0xf]
        %v2150 = vld [vmem:[%s5 + $0x1c] sm:$0xf]
        %v2151 = vld [vmem:[%s5 + $0x20] sm:$0xf]
        %v2152 = vld [vmem:[%s5 + $0x24] sm:$0xf]
        %v2153 = vld [vmem:[%s5 + $0x28] sm:$0xf]
        %v2154 = vld [vmem:[%s5 + $0x2c] sm:$0xf]
        %v2155 = vld [vmem:[%s5 + $0x30] sm:$0xf]
        %v2156 = vld [vmem:[%s5 + $0x34] sm:$0xf]
        %v2157 = vld [vmem:[%s5 + $0x38] sm:$0xf]
        %v2158 = vld [vmem:[%s5 + $0x3c] sm:$0xf]
        %v2159 = vld [vmem:[%s5 + $0x40] sm:$0xf]
        %v2160 = vld [vmem:[%s5 + $0x44] sm:$0xf]
        %v2161 = vld [vmem:[%s5 + $0x48] sm:$0xf]
        %v2162 = vld [vmem:[%s5 + $0x4c] sm:$0xf]
        %v2163 = vld [vmem:[%s5 + $0x50] sm:$0xf]
        %v2164 = vld [vmem:[%s5 + $0x54] sm:$0xf]
        %v2165 = vld [vmem:[%s5 + $0x58] sm:$0xf]
        %v2166 = vld [vmem:[%s5 + $0x5c] sm:$0xf]
        %v2167 = vld [vmem:[%s5 + $0x60] sm:$0xf]
        %v2168 = vld [vmem:[%s5 + $0x64] sm:$0xf]
        %v2169 = vld [vmem:[%s5 + $0x68] sm:$0xf]
        %v2170 = vld [vmem:[%s5 + $0x6c] sm:$0xf]
        %v2171 = vld [vmem:[%s5 + $0x70] sm:$0xf]
        %v2172 = vld [vmem:[%s5 + $0x74] sm:$0xf]
        %v2173 = vld [vmem:[%s5 + $0x78] sm:$0xf]
        %v2174 = vld [vmem:[%s5 + $0x7c] sm:$0xf]
        %v2175 = vld [vmem:[%s6] sm:$0x1]
        %v2177 = vlaneseq
        %v2178 = vshrl.u32 %v2177, 7
        %v2179 = vsub.s32 0, %v2178
        %v2180 = vrot.slane %v2175, %v2179
        %v2214 = vunpack.c.l.b16 %v2143
        %v2215 = vunpack.c.l.b16 %v2144
        %v2216 = vunpack.c.l.b16 %v2145
        %v2217 = vunpack.c.l.b16 %v2146
        %v2218 = vunpack.c.l.b16 %v2147
        %v2219 = vunpack.c.l.b16 %v2148
        %v2220 = vunpack.c.l.b16 %v2149
        %v2221 = vunpack.c.l.b16 %v2150
        %v2222 = vunpack.c.l.b16 %v2151
        %v2223 = vunpack.c.l.b16 %v2152
        %v2224 = vunpack.c.l.b16 %v2153
        %v2225 = vunpack.c.l.b16 %v2154
        %v2226 = vunpack.c.l.b16 %v2155
        %v2227 = vunpack.c.l.b16 %v2156
        %v2228 = vunpack.c.l.b16 %v2157
        %v2229 = vunpack.c.l.b16 %v2158
        %v2230 = vunpack.c.l.b16 %v2159
        %v2231 = vunpack.c.l.b16 %v2160
        %v2232 = vunpack.c.l.b16 %v2161
        %v2233 = vunpack.c.l.b16 %v2162
        %v2234 = vunpack.c.l.b16 %v2163
        %v2235 = vunpack.c.l.b16 %v2164
        %v2236 = vunpack.c.l.b16 %v2165
        %v2237 = vunpack.c.l.b16 %v2166
        %v2238 = vunpack.c.l.b16 %v2167
        %v2239 = vunpack.c.l.b16 %v2168
        %v2240 = vunpack.c.l.b16 %v2169
        %v2241 = vunpack.c.l.b16 %v2170
        %v2242 = vunpack.c.l.b16 %v2171
        %v2243 = vunpack.c.l.b16 %v2172
        %v2244 = vunpack.c.l.b16 %v2173
        %v2245 = vunpack.c.l.b16 %v2174
        %v2246 = vpack.c.b16 %v2215, %v2214
        %v2247 = vpack.c.b16 %v2217, %v2216
        %v2248 = vpack.c.b16 %v2219, %v2218
        %v2249 = vpack.c.b16 %v2221, %v2220
        %v2250 = vpack.c.b16 %v2223, %v2222
        %v2251 = vpack.c.b16 %v2225, %v2224
        %v2252 = vpack.c.b16 %v2227, %v2226
        %v2253 = vpack.c.b16 %v2229, %v2228
        %v2254 = vpack.c.b16 %v2231, %v2230
        %v2255 = vpack.c.b16 %v2233, %v2232
        %v2256 = vpack.c.b16 %v2235, %v2234
        %v2257 = vpack.c.b16 %v2237, %v2236
        %v2258 = vpack.c.b16 %v2239, %v2238
        %v2259 = vpack.c.b16 %v2241, %v2240
        %v2260 = vpack.c.b16 %v2243, %v2242
        %v2261 = vpack.c.b16 %v2245, %v2244
        %2278 = vmatprep.subr.bf16.mxu0 0
        %2279 = vmatpush1.bf16.msra.mxu0 %v2253
        %2280 = vmatprep.subr.bf16.mxu0 0
        %2281 = vmatpush1.bf16.msra.mxu0 %v2252
        %2282 = vmatprep.subr.bf16.mxu0 0
        %2283 = vmatpush1.bf16.msra.mxu0 %v2251
        %2284 = vmatprep.subr.bf16.mxu0 0
        %2285 = vmatpush1.bf16.msra.mxu0 %v2250
        %2286 = vmatprep.subr.bf16.mxu0 0
        %2287 = vmatpush1.bf16.msra.mxu0 %v2249
        %2288 = vmatprep.subr.bf16.mxu0 0
        %2289 = vmatpush1.bf16.msra.mxu0 %v2248
        %2290 = vmatprep.subr.bf16.mxu0 0
        %2291 = vmatpush1.bf16.msra.mxu0 %v2247
        %2292 = vmatprep.subr.bf16.mxu0 0
        %2293 = vmatpush1.bf16.msra.mxu0 %v2246
        %2294 = vmatprep.subr.bf16.mxu0 0
        %2295 = vmatpush2.bf16.msra.mxu0 %v2261
        %2296 = vmatprep.subr.bf16.mxu0 0
        %2297 = vmatpush2.bf16.msra.mxu0 %v2260
        %2298 = vmatprep.subr.bf16.mxu0 0
        %2299 = vmatpush2.bf16.msra.mxu0 %v2259
        %2300 = vmatprep.subr.bf16.mxu0 0
        %2301 = vmatpush2.bf16.msra.mxu0 %v2258
        %2302 = vmatprep.subr.bf16.mxu0 0
        %2303 = vmatpush2.bf16.msra.mxu0 %v2257
        %2304 = vmatprep.subr.bf16.mxu0 0
        %2305 = vmatpush2.bf16.msra.mxu0 %v2256
        %2306 = vmatprep.subr.bf16.mxu0 0
        %2307 = vmatpush2.bf16.msra.mxu0 %v2255
        %2308 = vmatprep.subr.bf16.mxu0 0
        %2309 = vmatpush2.bf16.msra.mxu0 %v2254
        %2310 = vmatprep.mubr.bf16.mxu0 %v2128
        %2311 = vmatmul.mubr.bf16.gmra.mxu0 %v2127
        %v2312 = vpop.f32.mrf.mxu0
        %v2313 = vadd.f32 %v2180, %v2312
        %v2314 = vpop.f32.mrf.mxu0
        %v2315 = vpop.f32.mrf.mxu0
        %v2316 = vadd.f32 %v2180, %v2315
        %v2317 = vpop.f32.mrf.mxu0
        %2318 = vmatprep.mubr.bf16.mxu0 %v2130
        %2319 = vmatmul.mubr.bf16.gmra.mxu0 %v2129
        %v2320 = vpop.f32.mrf.mxu0
        %v2321 = vadd.f32 %v2180, %v2320
        %v2322 = vpop.f32.mrf.mxu0
        %v2323 = vpop.f32.mrf.mxu0
        %v2324 = vadd.f32 %v2180, %v2323
        %v2325 = vpop.f32.mrf.mxu0
        %2326 = vmatprep.mubr.bf16.mxu0 %v2132
        %2327 = vmatmul.mubr.bf16.gmra.mxu0 %v2131
        %v2328 = vpop.f32.mrf.mxu0
        %v2329 = vadd.f32 %v2180, %v2328
        %v2330 = vpop.f32.mrf.mxu0
        %v2331 = vpop.f32.mrf.mxu0
        %v2332 = vadd.f32 %v2180, %v2331
        %v2333 = vpop.f32.mrf.mxu0
        %2334 = vmatprep.mubr.bf16.mxu0 %v2134
        %2335 = vmatmul.mubr.bf16.gmra.mxu0 %v2133
        %v2336 = vpop.f32.mrf.mxu0
        %v2337 = vadd.f32 %v2180, %v2336
        %v2338 = vpop.f32.mrf.mxu0
        %v2339 = vpop.f32.mrf.mxu0
        %v2340 = vadd.f32 %v2180, %v2339
        %v2341 = vpop.f32.mrf.mxu0
        %2342 = vmatprep.mubr.bf16.mxu0 %v2136
        %2343 = vmatmul.mubr.bf16.gmra.mxu0 %v2135
        %v2344 = vpop.f32.mrf.mxu0
        %v2345 = vadd.f32 %v2180, %v2344
        %v2346 = vpop.f32.mrf.mxu0
        %v2347 = vpop.f32.mrf.mxu0
        %v2348 = vadd.f32 %v2180, %v2347
        %v2349 = vpop.f32.mrf.mxu0
        %2350 = vmatprep.mubr.bf16.mxu0 %v2138
        %2351 = vmatmul.mubr.bf16.gmra.mxu0 %v2137
        %v2352 = vpop.f32.mrf.mxu0
        %v2353 = vadd.f32 %v2180, %v2352
        %v2354 = vpop.f32.mrf.mxu0
        %v2355 = vpop.f32.mrf.mxu0
        %v2356 = vadd.f32 %v2180, %v2355
        %v2357 = vpop.f32.mrf.mxu0
        %2358 = vmatprep.mubr.bf16.mxu0 %v2140
        %2359 = vmatmul.mubr.bf16.gmra.mxu0 %v2139
        %v2360 = vpop.f32.mrf.mxu0
        %v2361 = vadd.f32 %v2180, %v2360
        %v2362 = vpop.f32.mrf.mxu0
        %v2363 = vpop.f32.mrf.mxu0
        %v2364 = vadd.f32 %v2180, %v2363
        %v2365 = vpop.f32.mrf.mxu0
        %2366 = vmatprep.mubr.bf16.mxu0 %v2142
        %2367 = vmatmul.mubr.bf16.gmra.mxu0 %v2141
        %v2368 = vpop.f32.mrf.mxu0
        %v2369 = vadd.f32 %v2180, %v2368
        %v2370 = vpop.f32.mrf.mxu0
        %v2371 = vpop.f32.mrf.mxu0
        %v2372 = vadd.f32 %v2180, %v2371
        %v2373 = vpop.f32.mrf.mxu0
        %2374 = vdwg.mxu0
        %2375 = vst [vmem:[%s285] sm:$0xff] %v2313
        %2376 = vst [vmem:[%s285 + $0x8] sm:$0xff] %v2316
        %2377 = vst [vmem:[%s285 + $0x10] sm:$0xff] %v2321
        %2378 = vst [vmem:[%s285 + $0x18] sm:$0xff] %v2324
        %2379 = vst [vmem:[%s285 + $0x20] sm:$0xff] %v2329
        %2380 = vst [vmem:[%s285 + $0x28] sm:$0xff] %v2332
        %2381 = vst [vmem:[%s285 + $0x30] sm:$0xff] %v2337
        %2382 = vst [vmem:[%s285 + $0x38] sm:$0xff] %v2340
        %2383 = vst [vmem:[%s285 + $0x40] sm:$0xff] %v2345
        %2384 = vst [vmem:[%s285 + $0x48] sm:$0xff] %v2348
        %2385 = vst [vmem:[%s285 + $0x50] sm:$0xff] %v2353
        %2386 = vst [vmem:[%s285 + $0x58] sm:$0xff] %v2356
        %2387 = vst [vmem:[%s285 + $0x60] sm:$0xff] %v2361
        %2388 = vst [vmem:[%s285 + $0x68] sm:$0xff] %v2364
        %2389 = vst [vmem:[%s285 + $0x70] sm:$0xff] %v2369
        %2390 = vst [vmem:[%s285 + $0x78] sm:$0xff] %v2372
        %s2391 = sand.u32 %s178, 1
        %s2392 = sand.u32 %s178, 1
        %s2393 = smul.addr %s2392, 128
        %s2394 = scalar_lea.vmem [#allocation2], %s2393
        // Predicated region
        $region49: #{net_forward.1} parent=47 // pred_check
          %p2395 = pneg %p188
        $region50: #{net_forward.1} parent=47 // pred_check_branch
          %2397 = sbr.rel (%p2395) target = $region52
        $region51: #{net_forward.1} parent=47 // pred_region
          %s2398 = smul.u32 16, %s18
          %s2399 = ssub.s32 38, %s2398
          %p2400 = scmp.lt.s32.totalorder %s2399, 16
          %s2401 = scalar_select %p2400, %s2399, 16
          %s2402 = smul.u32 128, %s2401
          %p2403 = scmp.ne.s32.totalorder 0, %s2402
          %s2404 = smul.addr %s2398, 8
          %s2405 = scalar_lea.vmem %s7, %s2404
          // Predicated region
          $region53: #{net_forward.1} parent=51 // pred_check
            %p2406 = pneg %p2403
          $region54: #{net_forward.1} parent=51 // pred_check_branch
            %2408 = sbr.rel (%p2406) target = $region56
          $region55: #{net_forward.1} parent=51 // pred_region
            // Predicated region
            $region57: #{net_forward.1} parent=55 // pred_check
              _
            $region58: #{net_forward.1} parent=55 // pred_check_branch
              %2410 = sbr.rel (0) target = $region60
            $region59: #{net_forward.1} parent=55 // pred_region
              // Predicated region
              $region79: #{net_forward.1} parent=59 // pred_check
                _
              $region80: #{net_forward.1} parent=59 // pred_check_branch
                %2490 = sbr.rel (0) target = $region82
              $region81: #{net_forward.1} parent=59 // pred_region
                %s2491 = sshrl.u32 %s2401, 4
                // While loop
                $region83: #{net_forward.1} parent=81 // loop_pre_header
                  _
                $region84: #{net_forward.1} parent=81 // loop_header
                  %s2493 = sphi 0, %s2495
                  %p2494 = scmp.ge.s32.totalorder %s2493, %s2491
                  %s2498 = sphi 0, %s2535
                  %s2499 = sphi %s2394, %s2538
                  %s2500 = sphi %s2405, %s2539
                $region85: #{net_forward.1} parent=81 // loop_header_branch
                  %2497 = sbr.rel (%p2494) target = $region89
                $region86: #{net_forward.1} parent=81 // loop_body
                  %v2501 = vld [vmem:[%s2499] sm:$0xff]
                  %2502 = vst [vmem:[%s2500] sm:$0xff] %v2501
                  %v2503 = vld [vmem:[%s2499 + $0x8] sm:$0xff]
                  %2504 = vst [vmem:[%s2500 + $0x8] sm:$0xff] %v2503
                  %v2505 = vld [vmem:[%s2499 + $0x10] sm:$0xff]
                  %2506 = vst [vmem:[%s2500 + $0x10] sm:$0xff] %v2505
                  %v2507 = vld [vmem:[%s2499 + $0x18] sm:$0xff]
                  %2508 = vst [vmem:[%s2500 + $0x18] sm:$0xff] %v2507
                  %v2509 = vld [vmem:[%s2499 + $0x20] sm:$0xff]
                  %2510 = vst [vmem:[%s2500 + $0x20] sm:$0xff] %v2509
                  %v2511 = vld [vmem:[%s2499 + $0x28] sm:$0xff]
                  %2512 = vst [vmem:[%s2500 + $0x28] sm:$0xff] %v2511
                  %v2513 = vld [vmem:[%s2499 + $0x30] sm:$0xff]
                  %2514 = vst [vmem:[%s2500 + $0x30] sm:$0xff] %v2513
                  %v2515 = vld [vmem:[%s2499 + $0x38] sm:$0xff]
                  %2516 = vst [vmem:[%s2500 + $0x38] sm:$0xff] %v2515
                  %v2517 = vld [vmem:[%s2499 + $0x40] sm:$0xff]
                  %2518 = vst [vmem:[%s2500 + $0x40] sm:$0xff] %v2517
                  %v2519 = vld [vmem:[%s2499 + $0x48] sm:$0xff]
                  %2520 = vst [vmem:[%s2500 + $0x48] sm:$0xff] %v2519
                  %v2521 = vld [vmem:[%s2499 + $0x50] sm:$0xff]
                  %2522 = vst [vmem:[%s2500 + $0x50] sm:$0xff] %v2521
                  %v2523 = vld [vmem:[%s2499 + $0x58] sm:$0xff]
                  %2524 = vst [vmem:[%s2500 + $0x58] sm:$0xff] %v2523
                  %v2525 = vld [vmem:[%s2499 + $0x60] sm:$0xff]
                  %2526 = vst [vmem:[%s2500 + $0x60] sm:$0xff] %v2525
                  %v2527 = vld [vmem:[%s2499 + $0x68] sm:$0xff]
                  %2528 = vst [vmem:[%s2500 + $0x68] sm:$0xff] %v2527
                  %v2529 = vld [vmem:[%s2499 + $0x70] sm:$0xff]
                  %2530 = vst [vmem:[%s2500 + $0x70] sm:$0xff] %v2529
                  %v2531 = vld [vmem:[%s2499 + $0x78] sm:$0xff]
                  %2532 = vst [vmem:[%s2500 + $0x78] sm:$0xff] %v2531
                  %s2533 = sadd.s32 1, %s2498
                  %p2534 = scmp.ge.s32.totalorder %s2533, %s2491
                  %s2535 = scalar_select %p2534, 0, %s2533
                  %s2536 = smul.u32 %s2535, 128
                  %s2537 = smul.u32 %s2535, 128
                  %s2538 = scalar_lea.vmem %s2394, %s2536 [#allocation2]
                  %s2539 = scalar_lea.vmem %s2405, %s2537
                $region87: #{net_forward.1} parent=81 // loop_footer
                  %s2495 = sadd.s32 %s2493, 1
                $region88: #{net_forward.1} parent=81 // loop_footer_branch
                  %2492 = sbr.rel target = $region84
                $region89: #{net_forward.1} parent=81 // loop_exit
                  _
                %s2540 = sshrl.u32 %s2401, 4
                %s2541 = sand.u32 %s2401, 15
                %s2542 = smul.u32 %s2540, 16
                %s2543 = smul.u32 8, %s2542
                %s2544 = scalar_lea.vmem %s2394, %s2543 [#allocation2]
                %s2545 = smul.u32 8, %s2542
                %s2546 = scalar_lea.vmem %s2405, %s2545
                // While loop
                $region90: #{net_forward.1} parent=81 // loop_pre_header
                  _
                $region91: #{net_forward.1} parent=81 // loop_header
                  %s2548 = sphi 0, %s2550
                  %p2549 = scmp.ge.s32.totalorder %s2548, %s2541
                  %s2553 = sphi 0, %s2560
                  %s2554 = sphi %s2544, %s2563
                  %s2555 = sphi %s2546, %s2564
                $region92: #{net_forward.1} parent=81 // loop_header_branch
                  %2552 = sbr.rel (%p2549) target = $region96
                $region93: #{net_forward.1} parent=81 // loop_body
                  %v2556 = vld [vmem:[%s2554] sm:$0xff]
                  %2557 = vst [vmem:[%s2555] sm:$0xff] %v2556
                  %s2558 = sadd.s32 1, %s2553
                  %p2559 = scmp.ge.s32.totalorder %s2558, %s2541
                  %s2560 = scalar_select %p2559, 0, %s2558
                  %s2561 = smul.u32 %s2560, 8
                  %s2562 = smul.u32 %s2560, 8
                  %s2563 = scalar_lea.vmem %s2544, %s2561 [#allocation2]
                  %s2564 = scalar_lea.vmem %s2546, %s2562
                $region94: #{net_forward.1} parent=81 // loop_footer
                  %s2550 = sadd.s32 %s2548, 1
                $region95: #{net_forward.1} parent=81 // loop_footer_branch
                  %2547 = sbr.rel target = $region91
                $region96: #{net_forward.1} parent=81 // loop_exit
                  _
              $region82: #{net_forward.1} parent=59 // pred_fallthru
                _
              // Predicated region
              $region97: #{net_forward.1} parent=59 // pred_check
                _
              $region98: #{net_forward.1} parent=59 // pred_check_branch
                %2566 = sbr.rel target = $region100
              $region99: #{net_forward.1} parent=59 // pred_region
                _
              $region100: #{net_forward.1} parent=59 // pred_fallthru
                _
            $region60: #{net_forward.1} parent=55 // pred_fallthru
              _
            // Predicated region
            $region61: #{net_forward.1} parent=55 // pred_check
              _
            $region62: #{net_forward.1} parent=55 // pred_check_branch
              %2412 = sbr.rel target = $region64
            $region63: #{net_forward.1} parent=55 // pred_region
              %s2414 = ssub.s32 256, 1
              %s2415 = sshrl.u32 %s2401, 4
              // While loop
              $region65: #{net_forward.1} parent=63 // loop_pre_header
                _
              $region66: #{net_forward.1} parent=63 // loop_header
                %s2417 = sphi 0, %s2419
                %p2418 = scmp.ge.s32.totalorder %s2417, %s2415
                %s2422 = sphi 0, %s2459
                %s2423 = sphi %s2394, %s2462
                %s2424 = sphi %s2405, %s2463
              $region67: #{net_forward.1} parent=63 // loop_header_branch
                %2421 = sbr.rel (%p2418) target = $region71
              $region68: #{net_forward.1} parent=63 // loop_body
                %v2425 = vld [vmem:[%s2423] sm:%s2414]
                %2426 = vst [vmem:[%s2424] sm:%s2414] %v2425
                %v2427 = vld [vmem:[%s2423 + $0x8] sm:%s2414]
                %2428 = vst [vmem:[%s2424 + $0x8] sm:%s2414] %v2427
                %v2429 = vld [vmem:[%s2423 + $0x10] sm:%s2414]
                %2430 = vst [vmem:[%s2424 + $0x10] sm:%s2414] %v2429
                %v2431 = vld [vmem:[%s2423 + $0x18] sm:%s2414]
                %2432 = vst [vmem:[%s2424 + $0x18] sm:%s2414] %v2431
                %v2433 = vld [vmem:[%s2423 + $0x20] sm:%s2414]
                %2434 = vst [vmem:[%s2424 + $0x20] sm:%s2414] %v2433
                %v2435 = vld [vmem:[%s2423 + $0x28] sm:%s2414]
                %2436 = vst [vmem:[%s2424 + $0x28] sm:%s2414] %v2435
                %v2437 = vld [vmem:[%s2423 + $0x30] sm:%s2414]
                %2438 = vst [vmem:[%s2424 + $0x30] sm:%s2414] %v2437
                %v2439 = vld [vmem:[%s2423 + $0x38] sm:%s2414]
                %2440 = vst [vmem:[%s2424 + $0x38] sm:%s2414] %v2439
                %v2441 = vld [vmem:[%s2423 + $0x40] sm:%s2414]
                %2442 = vst [vmem:[%s2424 + $0x40] sm:%s2414] %v2441
                %v2443 = vld [vmem:[%s2423 + $0x48] sm:%s2414]
                %2444 = vst [vmem:[%s2424 + $0x48] sm:%s2414] %v2443
                %v2445 = vld [vmem:[%s2423 + $0x50] sm:%s2414]
                %2446 = vst [vmem:[%s2424 + $0x50] sm:%s2414] %v2445
                %v2447 = vld [vmem:[%s2423 + $0x58] sm:%s2414]
                %2448 = vst [vmem:[%s2424 + $0x58] sm:%s2414] %v2447
                %v2449 = vld [vmem:[%s2423 + $0x60] sm:%s2414]
                %2450 = vst [vmem:[%s2424 + $0x60] sm:%s2414] %v2449
                %v2451 = vld [vmem:[%s2423 + $0x68] sm:%s2414]
                %2452 = vst [vmem:[%s2424 + $0x68] sm:%s2414] %v2451
                %v2453 = vld [vmem:[%s2423 + $0x70] sm:%s2414]
                %2454 = vst [vmem:[%s2424 + $0x70] sm:%s2414] %v2453
                %v2455 = vld [vmem:[%s2423 + $0x78] sm:%s2414]
                %2456 = vst [vmem:[%s2424 + $0x78] sm:%s2414] %v2455
                %s2457 = sadd.s32 1, %s2422
                %p2458 = scmp.ge.s32.totalorder %s2457, %s2415
                %s2459 = scalar_select %p2458, 0, %s2457
                %s2460 = smul.u32 %s2459, 128
                %s2461 = smul.u32 %s2459, 128
                %s2462 = scalar_lea.vmem %s2394, %s2460 [#allocation2]
                %s2463 = scalar_lea.vmem %s2405, %s2461
              $region69: #{net_forward.1} parent=63 // loop_footer
                %s2419 = sadd.s32 %s2417, 1
              $region70: #{net_forward.1} parent=63 // loop_footer_branch
                %2416 = sbr.rel target = $region66
              $region71: #{net_forward.1} parent=63 // loop_exit
                _
              %s2464 = sshrl.u32 %s2401, 4
              %s2465 = sand.u32 %s2401, 15
              %s2466 = smul.u32 %s2464, 16
              %s2467 = smul.u32 8, %s2466
              %s2468 = scalar_lea.vmem %s2394, %s2467 [#allocation2]
              %s2469 = smul.u32 8, %s2466
              %s2470 = scalar_lea.vmem %s2405, %s2469
              // While loop
              $region72: #{net_forward.1} parent=63 // loop_pre_header
                _
              $region73: #{net_forward.1} parent=63 // loop_header
                %s2472 = sphi 0, %s2474
                %p2473 = scmp.ge.s32.totalorder %s2472, %s2465
                %s2477 = sphi 0, %s2484
                %s2478 = sphi %s2468, %s2487
                %s2479 = sphi %s2470, %s2488
              $region74: #{net_forward.1} parent=63 // loop_header_branch
                %2476 = sbr.rel (%p2473) target = $region78
              $region75: #{net_forward.1} parent=63 // loop_body
                %v2480 = vld [vmem:[%s2478] sm:%s2414]
                %2481 = vst [vmem:[%s2479] sm:%s2414] %v2480
                %s2482 = sadd.s32 1, %s2477
                %p2483 = scmp.ge.s32.totalorder %s2482, %s2465
                %s2484 = scalar_select %p2483, 0, %s2482
                %s2485 = smul.u32 %s2484, 8
                %s2486 = smul.u32 %s2484, 8
                %s2487 = scalar_lea.vmem %s2468, %s2485 [#allocation2]
                %s2488 = scalar_lea.vmem %s2470, %s2486
              $region76: #{net_forward.1} parent=63 // loop_footer
                %s2474 = sadd.s32 %s2472, 1
              $region77: #{net_forward.1} parent=63 // loop_footer_branch
                %2471 = sbr.rel target = $region73
              $region78: #{net_forward.1} parent=63 // loop_exit
                _
            $region64: #{net_forward.1} parent=55 // pred_fallthru
              _
          $region56: #{net_forward.1} parent=51 // pred_fallthru
            _
          %2567 = vnop
        $region52: #{net_forward.1} parent=47 // pred_fallthru
          _
      $region48: #{net_forward.1} parent=5 // pred_fallthru
        _
      %p2568 = scmp.le.s32.totalorder 2, %s13
      // Predicated region
      $region101: #{net_forward.1} parent=5 // pred_check
        %p2569 = pneg %p2568
      $region102: #{net_forward.1} parent=5 // pred_check_branch
        %2571 = sbr.rel (%p2569) target = $region104
      $region103: #{net_forward.1} parent=5 // pred_region
        %s2572 = ssub.s32 %s13, 2
        // Predicated region
        $region105: #{net_forward.1} parent=103 // pred_check
          %p2573 = pneg %p194
        $region106: #{net_forward.1} parent=103 // pred_check_branch
          %2575 = sbr.rel (%p2573) target = $region108
        $region107: #{net_forward.1} parent=103 // pred_region
          %s2576 = sand.u32 %s179, 1
          %s2577 = sand.u32 %s179, 1
          %s2578 = smul.addr %s2577, 128
          %s2579 = scalar_lea.vmem [#allocation2], %s2578
        $region108: #{net_forward.1} parent=103 // pred_fallthru
          _
      $region104: #{net_forward.1} parent=5 // pred_fallthru
        _
    $region6: #{net_forward.1} parent=1 // loop_footer
      %s17 = sadd.s32 1, %s13
    $region7: #{net_forward.1} parent=1 // loop_footer_branch
      %12 = sbr.rel target = $region3
    $region8: #{net_forward.1} parent=1 // loop_exit
      _

</llo_original>
